<compile_context>
chip_gen: v5e
topology: v5e:2x2
jax: 0.10.0
libtpu: 0.0.40
codegen_flags: <defaults>
</compile_context>

<pallas_src>
import jax
import jax.numpy as jnp
import numpy as np
from jax.experimental import pallas as pl
from jax.experimental.pallas import tpu as pltpu

NUM_MODELS = 4
INPUT = 16                      # LSTM input size
HIDDEN = 32                     # LSTM hidden size per submodel
GH = NUM_MODELS * HIDDEN        # 128  fused hidden width
MLP_HID = 64                    # per-submodel MLP hidden
OUT_FEAT = 16                   # per-submodel MLP output
FEATURE = NUM_MODELS * OUT_FEAT # 64
COMB_HID = 256
NUM_CLASSES = 5
OUT_PAD = 128                   # lane-dense padded output width


# ----------------------------------------------------------------------------
# Single fused kernel: 4-way fused LSTM recurrence + heads + combined layers.
# Grid = (num_batch_tiles,) marked "parallel"; weights are full-extent blocks.
# ----------------------------------------------------------------------------
def fused_kernel(x_ref, wih_ref, whh_ref, b_ref,
                 w1_ref, b1_ref, w2c1_ref, bcf_ref,
                 wc2_ref, bc2_ref, out_ref):
    bt = out_ref.shape[0]                     # batch rows in this tile
    seq = x_ref.shape[1] // bt                # static

    x2d = x_ref[0]                            # (seq*bt, INPUT), rows ordered t*bt + b
    whh = whh_ref[...]                        # (GH, 4*GH)  block-diag, gate-grouped

    # Input projection + bias for ALL timesteps: one latency-hidden MXU pass,
    # removed from the serial dependence chain.
    pre = jnp.dot(x2d, wih_ref[...], preferred_element_type=jnp.float32) + b_ref[...]

    h = jnp.zeros((bt, GH), jnp.float32)
    c = jnp.zeros((bt, GH), jnp.float32)

    # Static fully-unrolled recurrence (seq is small & trace-time constant).
    # TODO(synk): for long sequences switch to lax.fori_loop(..., unroll=2..4).
    for t in range(seq):
        gates = pre[t * bt:(t + 1) * bt, :] + jnp.dot(
            h, whh, preferred_element_type=jnp.float32)       # (bt, 4*GH)
        # Gate layout [I | F | O | G]: one sigmoid over 3*GH lanes, one tanh over GH.
        sig = jax.nn.sigmoid(gates[:, :3 * GH])
        g = jnp.tanh(gates[:, 3 * GH:])
        i = sig[:, 0 * GH:1 * GH]
        f = sig[:, 1 * GH:2 * GH]
        o = sig[:, 2 * GH:3 * GH]
        c = f * c + i * g
        h = o * jnp.tanh(c)                                    # (bt, GH)

    # Per-submodel MLP layer-1 (block-diag), then the pre-folded
    # (head layer-2 ∘ combined layer-1) dense matmul, then the padded final layer.
    z1 = jnp.maximum(
        jnp.dot(h, w1_ref[...], preferred_element_type=jnp.float32) + b1_ref[...], 0.0)
    z2 = jnp.maximum(
        jnp.dot(z1, w2c1_ref[...], preferred_element_type=jnp.float32) + bcf_ref[...], 0.0)
    # Dropout(0.2) is identity in eval mode.
    out_ref[...] = (jnp.dot(z2, wc2_ref[...], preferred_element_type=jnp.float32)
                    + bc2_ref[...]).astype(out_ref.dtype)


# ----------------------------------------------------------------------------
# Wrapper
# ----------------------------------------------------------------------------
@jax.jit
def combined_lstm_forward(x, fused_params):
    # x: (batch, seq, INPUT)  batch_first
    (wih_f, whh_f, b_f, w1_f, b1_f, w2c1, bcf, wc2_p, bc2_p) = fused_params
    batch, seq, inp = x.shape

    bt = batch                      # one batch tile at this size; tile for larger batches
    n_tiles = batch // bt

    # Arrange x so each grid tile sees a contiguous (seq*bt, INPUT) slab with rows
    # ordered t*bt + b_local (cheap XLA layout plumbing, done once outside the kernel).
    xp = jnp.transpose(x, (1, 0, 2)).reshape(seq, n_tiles, bt, inp)
    xp = jnp.transpose(xp, (1, 0, 2, 3)).reshape(n_tiles, seq * bt, inp)

    out_pad = pl.pallas_call(
        fused_kernel,
        out_shape=jax.ShapeDtypeStruct((batch, OUT_PAD), jnp.float32),
        grid=(n_tiles,),
        in_specs=[
            pl.BlockSpec((1, seq * bt, inp), lambda g: (g, 0, 0)),
            pl.BlockSpec((INPUT, 4 * GH), lambda g: (0, 0)),
            pl.BlockSpec((GH, 4 * GH), lambda g: (0, 0)),
            pl.BlockSpec((1, 4 * GH), lambda g: (0, 0)),
            pl.BlockSpec((GH, NUM_MODELS * MLP_HID), lambda g: (0, 0)),
            pl.BlockSpec((1, NUM_MODELS * MLP_HID), lambda g: (0, 0)),
            pl.BlockSpec((NUM_MODELS * MLP_HID, COMB_HID), lambda g: (0, 0)),
            pl.BlockSpec((1, COMB_HID), lambda g: (0, 0)),
            pl.BlockSpec((COMB_HID, OUT_PAD), lambda g: (0, 0)),
            pl.BlockSpec((1, OUT_PAD), lambda g: (0, 0)),
        ],
        out_specs=pl.BlockSpec((bt, OUT_PAD), lambda g: (g, 0)),
        compiler_params=pltpu.CompilerParams(
            dimension_semantics=("parallel",)),
    )(xp, wih_f, whh_f, b_f, w1_f, b1_f, w2c1, bcf, wc2_p, bc2_p)

    return out_pad[:, :NUM_CLASSES]


# ----------------------------------------------------------------------------
# Parameter fusion: gate-grouped / block-diagonal fused weights + offline folds.
# Fused gate layout: columns [I(128) | F(128) | O(128) | G(128)], each group
# ordered [model0(32) | ... | model3(32)], matching h = [h_m0 | h_m1 | h_m2 | h_m3].
# ----------------------------------------------------------------------------
def fuse_params(raw):
    wih, whh, blstm, w1, b1, w2, b2, wc1s, bc1, wc2, bc2 = raw
    M, H = NUM_MODELS, HIDDEN

    # Per-model native column order is [m][gate i,f,g,o][h]; target is
    # gate-grouped [i,f,o,g][m][h] so the 3 sigmoid gates are lane-contiguous.
    gate_order = jnp.array([0, 1, 3, 2])  # i, f, o, g
    perm = (jnp.arange(M * 4 * H).reshape(M, 4, H)[:, gate_order, :]
            .transpose(1, 0, 2).reshape(-1))

    wih_f = jnp.transpose(wih, (1, 0, 2)).reshape(INPUT, M * 4 * H)[:, perm]
    whh_f = jax.scipy.linalg.block_diag(*whh)[:, perm]            # (GH, 4*GH)
    b_f = blstm.reshape(1, M * 4 * H)[:, perm]                    # (1, 4*GH)

    # Per-model MLP layer-1 as one block-diagonal matrix.
    w1_f = jax.scipy.linalg.block_diag(*w1)                       # (GH, 256)
    b1_f = b1.reshape(1, M * MLP_HID)

    # Fold (per-model MLP layer-2, block-diag) into (combined layer-1):
    # valid because dropout is identity in eval and there is no nonlinearity between.
    w2_f = jax.scipy.linalg.block_diag(*w2)                       # (256, 64)
    b2_f = b2.reshape(1, M * OUT_FEAT)
    wc1 = wc1s.reshape(FEATURE, COMB_HID)                         # (64, 256)
    w2c1 = w2_f @ wc1                                             # (256, 256)
    bcf = b2_f @ wc1 + bc1                                        # (1, 256)

    # Pad the final layer to 128 lane-dense output columns (zeros).
    wc2_p = jnp.zeros((COMB_HID, OUT_PAD), jnp.float32).at[:, :NUM_CLASSES].set(wc2)
    bc2_p = jnp.zeros((1, OUT_PAD), jnp.float32).at[:, :NUM_CLASSES].set(bc2)

    # NOTE: on v6e/v7x the fused weights could be .astype(jnp.bfloat16) here to halve
    # weight DMA (keep f32 accumulation); f32 kept so the reference check stays tight.
    return (wih_f, whh_f, b_f, w1_f, b1_f, w2c1, bcf, wc2_p, bc2_p)


# ----------------------------------------------------------------------------
# Pure-JAX reference (per-model form, same math) for the correctness check.
# ----------------------------------------------------------------------------
def reference_forward(x, params):
    wih, whh, blstm, w1, b1, w2, b2, wc1s, bc1, wc2, bc2 = params
    batch, seq, _ = x.shape
    feats = []
    for m in range(NUM_MODELS):
        h = jnp.zeros((batch, HIDDEN), jnp.float32)
        c = jnp.zeros((batch, HIDDEN), jnp.float32)
        for t in range(seq):
            gates = x[:, t, :] @ wih[m] + h @ whh[m] + blstm[m, 0]
            i = jax.nn.sigmoid(gates[:, 0:HIDDEN])
            f = jax.nn.sigmoid(gates[:, HIDDEN:2 * HIDDEN])
            g = jnp.tanh(gates[:, 2 * HIDDEN:3 * HIDDEN])
            o = jax.nn.sigmoid(gates[:, 3 * HIDDEN:4 * HIDDEN])
            c = f * c + i * g
            h = o * jnp.tanh(c)
        z = jax.nn.relu(h @ w1[m] + b1[m, 0])
        feats.append(z @ w2[m] + b2[m, 0])
    combined = jnp.concatenate(feats, axis=1)
    wc1 = wc1s.reshape(FEATURE, COMB_HID)
    z = jax.nn.relu(combined @ wc1 + bc1[0])
    return z @ wc2 + bc2[0]


def init_params(key):
    ks = jax.random.split(key, 11)
    s = 0.1
    wih = s * jax.random.normal(ks[0], (NUM_MODELS, INPUT, 4 * HIDDEN), jnp.float32)
    whh = s * jax.random.normal(ks[1], (NUM_MODELS, HIDDEN, 4 * HIDDEN), jnp.float32)
    # NOTE: PyTorch nn.LSTM stores weight_ih/weight_hh as (4H, in) (transpose needed) and
    # has separate bias_ih + bias_hh; map real checkpoints as b = bias_ih + bias_hh.
    blstm = s * jax.random.normal(ks[2], (NUM_MODELS, 1, 4 * HIDDEN), jnp.float32)
    w1 = s * jax.random.normal(ks[3], (NUM_MODELS, HIDDEN, MLP_HID), jnp.float32)
    b1 = s * jax.random.normal(ks[4], (NUM_MODELS, 1, MLP_HID), jnp.float32)
    w2 = s * jax.random.normal(ks[5], (NUM_MODELS, MLP_HID, OUT_FEAT), jnp.float32)
    b2 = s * jax.random.normal(ks[6], (NUM_MODELS, 1, OUT_FEAT), jnp.float32)
    # First combined-layer weight, stored pre-split per submodel along the concat axis.
    wc1s = s * jax.random.normal(ks[7], (NUM_MODELS, OUT_FEAT, COMB_HID), jnp.float32)
    bc1 = s * jax.random.normal(ks[8], (1, COMB_HID), jnp.float32)
    wc2 = s * jax.random.normal(ks[9], (COMB_HID, NUM_CLASSES), jnp.float32)
    bc2 = s * jax.random.normal(ks[10], (1, NUM_CLASSES), jnp.float32)
    return (wih, whh, blstm, w1, b1, w2, b2, wc1s, bc1, wc2, bc2)


if __name__ == "__main__":
    key = jax.random.PRNGKey(0)
    kx, kp = jax.random.split(key)
    batch, seq = 2, 8
    x = jax.random.normal(kx, (batch, seq, INPUT), jnp.float32)

    raw_params = init_params(kp)
    fused_params = fuse_params(raw_params)

    out = combined_lstm_forward(x, fused_params)
    out = jax.block_until_ready(out)
    assert out.shape == (batch, NUM_CLASSES)

    ref = reference_forward(x, raw_params)
    np.testing.assert_allclose(np.asarray(out), np.asarray(ref), rtol=1e-3, atol=1e-3)

    print("KERNEL_OK")
</pallas_src>

<mosaic_0001>
module attributes {stable_mosaic.version = 11 : i64} {
  func.func @fused_kernel(%arg0: i32, %arg1: memref<1x16x16xf32, #tpu.memory_space<vmem>>, %arg2: memref<16x512xf32, #tpu.memory_space<vmem>>, %arg3: memref<128x512xf32, #tpu.memory_space<vmem>>, %arg4: memref<1x512xf32, #tpu.memory_space<vmem>>, %arg5: memref<128x256xf32, #tpu.memory_space<vmem>>, %arg6: memref<1x256xf32, #tpu.memory_space<vmem>>, %arg7: memref<256x256xf32, #tpu.memory_space<vmem>>, %arg8: memref<1x256xf32, #tpu.memory_space<vmem>>, %arg9: memref<256x128xf32, #tpu.memory_space<vmem>>, %arg10: memref<1x128xf32, #tpu.memory_space<vmem>>, %arg11: memref<2x128xf32, #tpu.memory_space<vmem>>) attributes {dimension_semantics = [#tpu.dimension_semantics<parallel>], iteration_bounds = array<i64: 1>, scalar_prefetch = 0 : i64, scratch_operands = 0 : i64, tpu.core_type = #tpu.core_type<tc>, window_params = [{transform_indices = @transform_0, window_bounds = array<i64: 1, 16, 16>}, {pipeline_mode = #tpu.pipeline_mode<synchronous>, transform_indices = @transform_1, window_bounds = array<i64: 16, 512>}, {pipeline_mode = #tpu.pipeline_mode<synchronous>, transform_indices = @transform_2, window_bounds = array<i64: 128, 512>}, {pipeline_mode = #tpu.pipeline_mode<synchronous>, transform_indices = @transform_3, window_bounds = array<i64: 1, 512>}, {pipeline_mode = #tpu.pipeline_mode<synchronous>, transform_indices = @transform_4, window_bounds = array<i64: 128, 256>}, {pipeline_mode = #tpu.pipeline_mode<synchronous>, transform_indices = @transform_5, window_bounds = array<i64: 1, 256>}, {pipeline_mode = #tpu.pipeline_mode<synchronous>, transform_indices = @transform_6, window_bounds = array<i64: 256, 256>}, {pipeline_mode = #tpu.pipeline_mode<synchronous>, transform_indices = @transform_7, window_bounds = array<i64: 1, 256>}, {pipeline_mode = #tpu.pipeline_mode<synchronous>, transform_indices = @transform_8, window_bounds = array<i64: 256, 128>}, {pipeline_mode = #tpu.pipeline_mode<synchronous>, transform_indices = @transform_9, window_bounds = array<i64: 1, 128>}, {transform_indices = @transform_10, window_bounds = array<i64: 2, 128>}]} {
    %c0 = arith.constant 0 : index
    %c0_0 = arith.constant 0 : index
    %c0_1 = arith.constant 0 : index
    %0 = vector.load %arg1[%c0, %c0_0, %c0_1] : memref<1x16x16xf32, #tpu.memory_space<vmem>>, vector<1x16x16xf32>
    %1 = vector.shape_cast %0 : vector<1x16x16xf32> to vector<16x16xf32>
    %c0_2 = arith.constant 0 : index
    %c0_3 = arith.constant 0 : index
    %2 = vector.load %arg3[%c0_2, %c0_3] : memref<128x512xf32, #tpu.memory_space<vmem>>, vector<128x512xf32>
    %c0_4 = arith.constant 0 : index
    %c0_5 = arith.constant 0 : index
    %3 = vector.load %arg2[%c0_4, %c0_5] : memref<16x512xf32, #tpu.memory_space<vmem>>, vector<16x512xf32>
    %cst = arith.constant dense<0.000000e+00> : vector<16x512xf32>
    %4 = tpu.matmul %1, %3, %cst {dimension_numbers = #tpu.dot_dimension_numbers<[1], [0], [0], [1], [0, 0, 1, 1], [], []>} : vector<16x16xf32>, vector<16x512xf32>, vector<16x512xf32> -> vector<16x512xf32>
    %c0_6 = arith.constant 0 : index
    %c0_7 = arith.constant 0 : index
    %5 = vector.load %arg4[%c0_6, %c0_7] : memref<1x512xf32, #tpu.memory_space<vmem>>, vector<1x512xf32>
    %6 = vector.broadcast %5 : vector<1x512xf32> to vector<16x512xf32>
    %7 = arith.addf %4, %6 : vector<16x512xf32>
    %cst_8 = arith.constant 0.000000e+00 : f32
    %8 = vector.broadcast %cst_8 : f32 to vector<2x128xf32>
    %cst_9 = arith.constant 0.000000e+00 : f32
    %9 = vector.broadcast %cst_9 : f32 to vector<2x128xf32>
    %10 = vector.extract_strided_slice %7 {offsets = [0, 0], sizes = [2, 512], strides = [1, 1]} : vector<16x512xf32> to vector<2x512xf32>
    %cst_10 = arith.constant dense<0.000000e+00> : vector<2x512xf32>
    %11 = tpu.matmul %8, %2, %cst_10 {dimension_numbers = #tpu.dot_dimension_numbers<[1], [0], [0], [1], [0, 0, 1, 1], [], []>} : vector<2x128xf32>, vector<128x512xf32>, vector<2x512xf32> -> vector<2x512xf32>
    %12 = arith.addf %10, %11 : vector<2x512xf32>
    %13 = vector.extract_strided_slice %12 {offsets = [0, 0], sizes = [2, 384], strides = [1, 1]} : vector<2x512xf32> to vector<2x384xf32>
    %14 = arith.negf %13 : vector<2x384xf32>
    %15 = math.exp %14 : vector<2x384xf32>
    %cst_11 = arith.constant 1.000000e+00 : f32
    %16 = vector.broadcast %cst_11 : f32 to vector<2x384xf32>
    %17 = arith.addf %16, %15 : vector<2x384xf32>
    %18 = arith.divf %16, %17 : vector<2x384xf32>
    %19 = vector.extract_strided_slice %12 {offsets = [0, 384], sizes = [2, 128], strides = [1, 1]} : vector<2x512xf32> to vector<2x128xf32>
    %20 = math.tanh %19 : vector<2x128xf32>
    %21 = vector.extract_strided_slice %18 {offsets = [0, 0], sizes = [2, 128], strides = [1, 1]} : vector<2x384xf32> to vector<2x128xf32>
    %22 = vector.extract_strided_slice %18 {offsets = [0, 128], sizes = [2, 128], strides = [1, 1]} : vector<2x384xf32> to vector<2x128xf32>
    %23 = vector.extract_strided_slice %18 {offsets = [0, 256], sizes = [2, 128], strides = [1, 1]} : vector<2x384xf32> to vector<2x128xf32>
    %24 = arith.mulf %22, %9 : vector<2x128xf32>
    %25 = arith.mulf %21, %20 : vector<2x128xf32>
    %26 = arith.addf %24, %25 : vector<2x128xf32>
    %27 = math.tanh %26 : vector<2x128xf32>
    %28 = arith.mulf %23, %27 : vector<2x128xf32>
    %29 = vector.extract_strided_slice %7 {offsets = [2, 0], sizes = [2, 512], strides = [1, 1]} : vector<16x512xf32> to vector<2x512xf32>
    %cst_12 = arith.constant dense<0.000000e+00> : vector<2x512xf32>
    %30 = tpu.matmul %28, %2, %cst_12 {dimension_numbers = #tpu.dot_dimension_numbers<[1], [0], [0], [1], [0, 0, 1, 1], [], []>} : vector<2x128xf32>, vector<128x512xf32>, vector<2x512xf32> -> vector<2x512xf32>
    %31 = arith.addf %29, %30 : vector<2x512xf32>
    %32 = vector.extract_strided_slice %31 {offsets = [0, 0], sizes = [2, 384], strides = [1, 1]} : vector<2x512xf32> to vector<2x384xf32>
    %33 = arith.negf %32 : vector<2x384xf32>
    %34 = math.exp %33 : vector<2x384xf32>
    %cst_13 = arith.constant 1.000000e+00 : f32
    %35 = vector.broadcast %cst_13 : f32 to vector<2x384xf32>
    %36 = arith.addf %35, %34 : vector<2x384xf32>
    %37 = arith.divf %35, %36 : vector<2x384xf32>
    %38 = vector.extract_strided_slice %31 {offsets = [0, 384], sizes = [2, 128], strides = [1, 1]} : vector<2x512xf32> to vector<2x128xf32>
    %39 = math.tanh %38 : vector<2x128xf32>
    %40 = vector.extract_strided_slice %37 {offsets = [0, 0], sizes = [2, 128], strides = [1, 1]} : vector<2x384xf32> to vector<2x128xf32>
    %41 = vector.extract_strided_slice %37 {offsets = [0, 128], sizes = [2, 128], strides = [1, 1]} : vector<2x384xf32> to vector<2x128xf32>
    %42 = vector.extract_strided_slice %37 {offsets = [0, 256], sizes = [2, 128], strides = [1, 1]} : vector<2x384xf32> to vector<2x128xf32>
    %43 = arith.mulf %41, %26 : vector<2x128xf32>
    %44 = arith.mulf %40, %39 : vector<2x128xf32>
    %45 = arith.addf %43, %44 : vector<2x128xf32>
    %46 = math.tanh %45 : vector<2x128xf32>
    %47 = arith.mulf %42, %46 : vector<2x128xf32>
    %48 = vector.extract_strided_slice %7 {offsets = [4, 0], sizes = [2, 512], strides = [1, 1]} : vector<16x512xf32> to vector<2x512xf32>
    %cst_14 = arith.constant dense<0.000000e+00> : vector<2x512xf32>
    %49 = tpu.matmul %47, %2, %cst_14 {dimension_numbers = #tpu.dot_dimension_numbers<[1], [0], [0], [1], [0, 0, 1, 1], [], []>} : vector<2x128xf32>, vector<128x512xf32>, vector<2x512xf32> -> vector<2x512xf32>
    %50 = arith.addf %48, %49 : vector<2x512xf32>
    %51 = vector.extract_strided_slice %50 {offsets = [0, 0], sizes = [2, 384], strides = [1, 1]} : vector<2x512xf32> to vector<2x384xf32>
    %52 = arith.negf %51 : vector<2x384xf32>
    %53 = math.exp %52 : vector<2x384xf32>
    %cst_15 = arith.constant 1.000000e+00 : f32
    %54 = vector.broadcast %cst_15 : f32 to vector<2x384xf32>
    %55 = arith.addf %54, %53 : vector<2x384xf32>
    %56 = arith.divf %54, %55 : vector<2x384xf32>
    %57 = vector.extract_strided_slice %50 {offsets = [0, 384], sizes = [2, 128], strides = [1, 1]} : vector<2x512xf32> to vector<2x128xf32>
    %58 = math.tanh %57 : vector<2x128xf32>
    %59 = vector.extract_strided_slice %56 {offsets = [0, 0], sizes = [2, 128], strides = [1, 1]} : vector<2x384xf32> to vector<2x128xf32>
    %60 = vector.extract_strided_slice %56 {offsets = [0, 128], sizes = [2, 128], strides = [1, 1]} : vector<2x384xf32> to vector<2x128xf32>
    %61 = vector.extract_strided_slice %56 {offsets = [0, 256], sizes = [2, 128], strides = [1, 1]} : vector<2x384xf32> to vector<2x128xf32>
    %62 = arith.mulf %60, %45 : vector<2x128xf32>
    %63 = arith.mulf %59, %58 : vector<2x128xf32>
    %64 = arith.addf %62, %63 : vector<2x128xf32>
    %65 = math.tanh %64 : vector<2x128xf32>
    %66 = arith.mulf %61, %65 : vector<2x128xf32>
    %67 = vector.extract_strided_slice %7 {offsets = [6, 0], sizes = [2, 512], strides = [1, 1]} : vector<16x512xf32> to vector<2x512xf32>
    %cst_16 = arith.constant dense<0.000000e+00> : vector<2x512xf32>
    %68 = tpu.matmul %66, %2, %cst_16 {dimension_numbers = #tpu.dot_dimension_numbers<[1], [0], [0], [1], [0, 0, 1, 1], [], []>} : vector<2x128xf32>, vector<128x512xf32>, vector<2x512xf32> -> vector<2x512xf32>
    %69 = arith.addf %67, %68 : vector<2x512xf32>
    %70 = vector.extract_strided_slice %69 {offsets = [0, 0], sizes = [2, 384], strides = [1, 1]} : vector<2x512xf32> to vector<2x384xf32>
    %71 = arith.negf %70 : vector<2x384xf32>
    %72 = math.exp %71 : vector<2x384xf32>
    %cst_17 = arith.constant 1.000000e+00 : f32
    %73 = vector.broadcast %cst_17 : f32 to vector<2x384xf32>
    %74 = arith.addf %73, %72 : vector<2x384xf32>
    %75 = arith.divf %73, %74 : vector<2x384xf32>
    %76 = vector.extract_strided_slice %69 {offsets = [0, 384], sizes = [2, 128], strides = [1, 1]} : vector<2x512xf32> to vector<2x128xf32>
    %77 = math.tanh %76 : vector<2x128xf32>
    %78 = vector.extract_strided_slice %75 {offsets = [0, 0], sizes = [2, 128], strides = [1, 1]} : vector<2x384xf32> to vector<2x128xf32>
    %79 = vector.extract_strided_slice %75 {offsets = [0, 128], sizes = [2, 128], strides = [1, 1]} : vector<2x384xf32> to vector<2x128xf32>
    %80 = vector.extract_strided_slice %75 {offsets = [0, 256], sizes = [2, 128], strides = [1, 1]} : vector<2x384xf32> to vector<2x128xf32>
    %81 = arith.mulf %79, %64 : vector<2x128xf32>
    %82 = arith.mulf %78, %77 : vector<2x128xf32>
    %83 = arith.addf %81, %82 : vector<2x128xf32>
    %84 = math.tanh %83 : vector<2x128xf32>
    %85 = arith.mulf %80, %84 : vector<2x128xf32>
    %86 = vector.extract_strided_slice %7 {offsets = [8, 0], sizes = [2, 512], strides = [1, 1]} : vector<16x512xf32> to vector<2x512xf32>
    %cst_18 = arith.constant dense<0.000000e+00> : vector<2x512xf32>
    %87 = tpu.matmul %85, %2, %cst_18 {dimension_numbers = #tpu.dot_dimension_numbers<[1], [0], [0], [1], [0, 0, 1, 1], [], []>} : vector<2x128xf32>, vector<128x512xf32>, vector<2x512xf32> -> vector<2x512xf32>
    %88 = arith.addf %86, %87 : vector<2x512xf32>
    %89 = vector.extract_strided_slice %88 {offsets = [0, 0], sizes = [2, 384], strides = [1, 1]} : vector<2x512xf32> to vector<2x384xf32>
    %90 = arith.negf %89 : vector<2x384xf32>
    %91 = math.exp %90 : vector<2x384xf32>
    %cst_19 = arith.constant 1.000000e+00 : f32
    %92 = vector.broadcast %cst_19 : f32 to vector<2x384xf32>
    %93 = arith.addf %92, %91 : vector<2x384xf32>
    %94 = arith.divf %92, %93 : vector<2x384xf32>
    %95 = vector.extract_strided_slice %88 {offsets = [0, 384], sizes = [2, 128], strides = [1, 1]} : vector<2x512xf32> to vector<2x128xf32>
    %96 = math.tanh %95 : vector<2x128xf32>
    %97 = vector.extract_strided_slice %94 {offsets = [0, 0], sizes = [2, 128], strides = [1, 1]} : vector<2x384xf32> to vector<2x128xf32>
    %98 = vector.extract_strided_slice %94 {offsets = [0, 128], sizes = [2, 128], strides = [1, 1]} : vector<2x384xf32> to vector<2x128xf32>
    %99 = vector.extract_strided_slice %94 {offsets = [0, 256], sizes = [2, 128], strides = [1, 1]} : vector<2x384xf32> to vector<2x128xf32>
    %100 = arith.mulf %98, %83 : vector<2x128xf32>
    %101 = arith.mulf %97, %96 : vector<2x128xf32>
    %102 = arith.addf %100, %101 : vector<2x128xf32>
    %103 = math.tanh %102 : vector<2x128xf32>
    %104 = arith.mulf %99, %103 : vector<2x128xf32>
    %105 = vector.extract_strided_slice %7 {offsets = [10, 0], sizes = [2, 512], strides = [1, 1]} : vector<16x512xf32> to vector<2x512xf32>
    %cst_20 = arith.constant dense<0.000000e+00> : vector<2x512xf32>
    %106 = tpu.matmul %104, %2, %cst_20 {dimension_numbers = #tpu.dot_dimension_numbers<[1], [0], [0], [1], [0, 0, 1, 1], [], []>} : vector<2x128xf32>, vector<128x512xf32>, vector<2x512xf32> -> vector<2x512xf32>
    %107 = arith.addf %105, %106 : vector<2x512xf32>
    %108 = vector.extract_strided_slice %107 {offsets = [0, 0], sizes = [2, 384], strides = [1, 1]} : vector<2x512xf32> to vector<2x384xf32>
    %109 = arith.negf %108 : vector<2x384xf32>
    %110 = math.exp %109 : vector<2x384xf32>
    %cst_21 = arith.constant 1.000000e+00 : f32
    %111 = vector.broadcast %cst_21 : f32 to vector<2x384xf32>
    %112 = arith.addf %111, %110 : vector<2x384xf32>
    %113 = arith.divf %111, %112 : vector<2x384xf32>
    %114 = vector.extract_strided_slice %107 {offsets = [0, 384], sizes = [2, 128], strides = [1, 1]} : vector<2x512xf32> to vector<2x128xf32>
    %115 = math.tanh %114 : vector<2x128xf32>
    %116 = vector.extract_strided_slice %113 {offsets = [0, 0], sizes = [2, 128], strides = [1, 1]} : vector<2x384xf32> to vector<2x128xf32>
    %117 = vector.extract_strided_slice %113 {offsets = [0, 128], sizes = [2, 128], strides = [1, 1]} : vector<2x384xf32> to vector<2x128xf32>
    %118 = vector.extract_strided_slice %113 {offsets = [0, 256], sizes = [2, 128], strides = [1, 1]} : vector<2x384xf32> to vector<2x128xf32>
    %119 = arith.mulf %117, %102 : vector<2x128xf32>
    %120 = arith.mulf %116, %115 : vector<2x128xf32>
    %121 = arith.addf %119, %120 : vector<2x128xf32>
    %122 = math.tanh %121 : vector<2x128xf32>
    %123 = arith.mulf %118, %122 : vector<2x128xf32>
    %124 = vector.extract_strided_slice %7 {offsets = [12, 0], sizes = [2, 512], strides = [1, 1]} : vector<16x512xf32> to vector<2x512xf32>
    %cst_22 = arith.constant dense<0.000000e+00> : vector<2x512xf32>
    %125 = tpu.matmul %123, %2, %cst_22 {dimension_numbers = #tpu.dot_dimension_numbers<[1], [0], [0], [1], [0, 0, 1, 1], [], []>} : vector<2x128xf32>, vector<128x512xf32>, vector<2x512xf32> -> vector<2x512xf32>
    %126 = arith.addf %124, %125 : vector<2x512xf32>
    %127 = vector.extract_strided_slice %126 {offsets = [0, 0], sizes = [2, 384], strides = [1, 1]} : vector<2x512xf32> to vector<2x384xf32>
    %128 = arith.negf %127 : vector<2x384xf32>
    %129 = math.exp %128 : vector<2x384xf32>
    %cst_23 = arith.constant 1.000000e+00 : f32
    %130 = vector.broadcast %cst_23 : f32 to vector<2x384xf32>
    %131 = arith.addf %130, %129 : vector<2x384xf32>
    %132 = arith.divf %130, %131 : vector<2x384xf32>
    %133 = vector.extract_strided_slice %126 {offsets = [0, 384], sizes = [2, 128], strides = [1, 1]} : vector<2x512xf32> to vector<2x128xf32>
    %134 = math.tanh %133 : vector<2x128xf32>
    %135 = vector.extract_strided_slice %132 {offsets = [0, 0], sizes = [2, 128], strides = [1, 1]} : vector<2x384xf32> to vector<2x128xf32>
    %136 = vector.extract_strided_slice %132 {offsets = [0, 128], sizes = [2, 128], strides = [1, 1]} : vector<2x384xf32> to vector<2x128xf32>
    %137 = vector.extract_strided_slice %132 {offsets = [0, 256], sizes = [2, 128], strides = [1, 1]} : vector<2x384xf32> to vector<2x128xf32>
    %138 = arith.mulf %136, %121 : vector<2x128xf32>
    %139 = arith.mulf %135, %134 : vector<2x128xf32>
    %140 = arith.addf %138, %139 : vector<2x128xf32>
    %141 = math.tanh %140 : vector<2x128xf32>
    %142 = arith.mulf %137, %141 : vector<2x128xf32>
    %143 = vector.extract_strided_slice %7 {offsets = [14, 0], sizes = [2, 512], strides = [1, 1]} : vector<16x512xf32> to vector<2x512xf32>
    %cst_24 = arith.constant dense<0.000000e+00> : vector<2x512xf32>
    %144 = tpu.matmul %142, %2, %cst_24 {dimension_numbers = #tpu.dot_dimension_numbers<[1], [0], [0], [1], [0, 0, 1, 1], [], []>} : vector<2x128xf32>, vector<128x512xf32>, vector<2x512xf32> -> vector<2x512xf32>
    %145 = arith.addf %143, %144 : vector<2x512xf32>
    %146 = vector.extract_strided_slice %145 {offsets = [0, 0], sizes = [2, 384], strides = [1, 1]} : vector<2x512xf32> to vector<2x384xf32>
    %147 = arith.negf %146 : vector<2x384xf32>
    %148 = math.exp %147 : vector<2x384xf32>
    %cst_25 = arith.constant 1.000000e+00 : f32
    %149 = vector.broadcast %cst_25 : f32 to vector<2x384xf32>
    %150 = arith.addf %149, %148 : vector<2x384xf32>
    %151 = arith.divf %149, %150 : vector<2x384xf32>
    %152 = vector.extract_strided_slice %145 {offsets = [0, 384], sizes = [2, 128], strides = [1, 1]} : vector<2x512xf32> to vector<2x128xf32>
    %153 = math.tanh %152 : vector<2x128xf32>
    %154 = vector.extract_strided_slice %151 {offsets = [0, 0], sizes = [2, 128], strides = [1, 1]} : vector<2x384xf32> to vector<2x128xf32>
    %155 = vector.extract_strided_slice %151 {offsets = [0, 128], sizes = [2, 128], strides = [1, 1]} : vector<2x384xf32> to vector<2x128xf32>
    %156 = vector.extract_strided_slice %151 {offsets = [0, 256], sizes = [2, 128], strides = [1, 1]} : vector<2x384xf32> to vector<2x128xf32>
    %157 = arith.mulf %155, %140 : vector<2x128xf32>
    %158 = arith.mulf %154, %153 : vector<2x128xf32>
    %159 = arith.addf %157, %158 : vector<2x128xf32>
    %160 = math.tanh %159 : vector<2x128xf32>
    %161 = arith.mulf %156, %160 : vector<2x128xf32>
    %c0_26 = arith.constant 0 : index
    %c0_27 = arith.constant 0 : index
    %162 = vector.load %arg5[%c0_26, %c0_27] : memref<128x256xf32, #tpu.memory_space<vmem>>, vector<128x256xf32>
    %cst_28 = arith.constant dense<0.000000e+00> : vector<2x256xf32>
    %163 = tpu.matmul %161, %162, %cst_28 {dimension_numbers = #tpu.dot_dimension_numbers<[1], [0], [0], [1], [0, 0, 1, 1], [], []>} : vector<2x128xf32>, vector<128x256xf32>, vector<2x256xf32> -> vector<2x256xf32>
    %c0_29 = arith.constant 0 : index
    %c0_30 = arith.constant 0 : index
    %164 = vector.load %arg6[%c0_29, %c0_30] : memref<1x256xf32, #tpu.memory_space<vmem>>, vector<1x256xf32>
    %165 = vector.broadcast %164 : vector<1x256xf32> to vector<2x256xf32>
    %166 = arith.addf %163, %165 : vector<2x256xf32>
    %cst_31 = arith.constant 0.000000e+00 : f32
    %167 = vector.broadcast %cst_31 : f32 to vector<2x256xf32>
    %168 = arith.maximumf %166, %167 : vector<2x256xf32>
    %c0_32 = arith.constant 0 : index
    %c0_33 = arith.constant 0 : index
    %169 = vector.load %arg7[%c0_32, %c0_33] : memref<256x256xf32, #tpu.memory_space<vmem>>, vector<256x256xf32>
    %cst_34 = arith.constant dense<0.000000e+00> : vector<2x256xf32>
    %170 = tpu.matmul %168, %169, %cst_34 {dimension_numbers = #tpu.dot_dimension_numbers<[1], [0], [0], [1], [0, 0, 1, 1], [], []>} : vector<2x256xf32>, vector<256x256xf32>, vector<2x256xf32> -> vector<2x256xf32>
    %c0_35 = arith.constant 0 : index
    %c0_36 = arith.constant 0 : index
    %171 = vector.load %arg8[%c0_35, %c0_36] : memref<1x256xf32, #tpu.memory_space<vmem>>, vector<1x256xf32>
    %172 = vector.broadcast %171 : vector<1x256xf32> to vector<2x256xf32>
    %173 = arith.addf %170, %172 : vector<2x256xf32>
    %cst_37 = arith.constant 0.000000e+00 : f32
    %174 = vector.broadcast %cst_37 : f32 to vector<2x256xf32>
    %175 = arith.maximumf %173, %174 : vector<2x256xf32>
    %c0_38 = arith.constant 0 : index
    %c0_39 = arith.constant 0 : index
    %176 = vector.load %arg9[%c0_38, %c0_39] : memref<256x128xf32, #tpu.memory_space<vmem>>, vector<256x128xf32>
    %cst_40 = arith.constant dense<0.000000e+00> : vector<2x128xf32>
    %177 = tpu.matmul %175, %176, %cst_40 {dimension_numbers = #tpu.dot_dimension_numbers<[1], [0], [0], [1], [0, 0, 1, 1], [], []>} : vector<2x256xf32>, vector<256x128xf32>, vector<2x128xf32> -> vector<2x128xf32>
    %c0_41 = arith.constant 0 : index
    %c0_42 = arith.constant 0 : index
    %178 = vector.load %arg10[%c0_41, %c0_42] : memref<1x128xf32, #tpu.memory_space<vmem>>, vector<1x128xf32>
    %179 = vector.broadcast %178 : vector<1x128xf32> to vector<2x128xf32>
    %180 = arith.addf %177, %179 : vector<2x128xf32>
    %c0_43 = arith.constant 0 : index
    %c0_44 = arith.constant 0 : index
    %181 = vector.load %arg11[%c0_43, %c0_44] : memref<2x128xf32, #tpu.memory_space<vmem>>, vector<2x128xf32>
    tpu.vector_store %arg11[%c0_43, %c0_44], %180 {strides = array<i32>} : memref<2x128xf32, #tpu.memory_space<vmem>>, vector<2x128xf32>,
    return
  }
  func.func @transform_0(%arg0: i32) -> (i32, i32, i32) {
    %c0_i32 = arith.constant 0 : i32
    %c0_i32_0 = arith.constant 0 : i32
    %c0_i32_1 = arith.constant 0 : i32
    return %arg0, %c0_i32, %c0_i32_0 : i32, i32, i32
  }
  func.func @transform_1(%arg0: i32) -> (i32, i32) {
    %c0_i32 = arith.constant 0 : i32
    %c0_i32_0 = arith.constant 0 : i32
    %c0_i32_1 = arith.constant 0 : i32
    return %c0_i32, %c0_i32_0 : i32, i32
  }
  func.func @transform_2(%arg0: i32) -> (i32, i32) {
    %c0_i32 = arith.constant 0 : i32
    %c0_i32_0 = arith.constant 0 : i32
    %c0_i32_1 = arith.constant 0 : i32
    return %c0_i32, %c0_i32_0 : i32, i32
  }
  func.func @transform_3(%arg0: i32) -> (i32, i32) {
    %c0_i32 = arith.constant 0 : i32
    %c0_i32_0 = arith.constant 0 : i32
    %c0_i32_1 = arith.constant 0 : i32
    return %c0_i32, %c0_i32_0 : i32, i32
  }
  func.func @transform_4(%arg0: i32) -> (i32, i32) {
    %c0_i32 = arith.constant 0 : i32
    %c0_i32_0 = arith.constant 0 : i32
    %c0_i32_1 = arith.constant 0 : i32
    return %c0_i32, %c0_i32_0 : i32, i32
  }
  func.func @transform_5(%arg0: i32) -> (i32, i32) {
    %c0_i32 = arith.constant 0 : i32
    %c0_i32_0 = arith.constant 0 : i32
    %c0_i32_1 = arith.constant 0 : i32
    return %c0_i32, %c0_i32_0 : i32, i32
  }
  func.func @transform_6(%arg0: i32) -> (i32, i32) {
    %c0_i32 = arith.constant 0 : i32
    %c0_i32_0 = arith.constant 0 : i32
    %c0_i32_1 = arith.constant 0 : i32
    return %c0_i32, %c0_i32_0 : i32, i32
  }
  func.func @transform_7(%arg0: i32) -> (i32, i32) {
    %c0_i32 = arith.constant 0 : i32
    %c0_i32_0 = arith.constant 0 : i32
    %c0_i32_1 = arith.constant 0 : i32
    return %c0_i32, %c0_i32_0 : i32, i32
  }
  func.func @transform_8(%arg0: i32) -> (i32, i32) {
    %c0_i32 = arith.constant 0 : i32
    %c0_i32_0 = arith.constant 0 : i32
    %c0_i32_1 = arith.constant 0 : i32
    return %c0_i32, %c0_i32_0 : i32, i32
  }
  func.func @transform_9(%arg0: i32) -> (i32, i32) {
    %c0_i32 = arith.constant 0 : i32
    %c0_i32_0 = arith.constant 0 : i32
    %c0_i32_1 = arith.constant 0 : i32
    return %c0_i32, %c0_i32_0 : i32, i32
  }
  func.func @transform_10(%arg0: i32) -> (i32, i32) {
    %c0_i32 = arith.constant 0 : i32
    %c0_i32_0 = arith.constant 0 : i32
    return %arg0, %c0_i32 : i32, i32
  }
}

</mosaic_0001>

<llo_original>
// kernel: combined_lstm_forward.1
$region0: #{combined_lstm_forward.1}
  #allocation0 [shape = 'u32[]', space=smem, size = 0x4, offset = 0x4, fixed_abs, tag = 'smem constant byte address 0x4 - core index']
  #allocation1 [shape = 'u32[72,128]{1,0:T(1,128)}', space=vmem, size = 0x9000, scoped, tag = 'internal scratch']
  %s0 = inlined_call_operand.vmem [shape: f32[1,16,16], index: 0, kind: input, shape index: {}]
  %s1 = inlined_call_operand.hbm [shape: f32[16,512], index: 1, kind: input, shape index: {}]
  %s2 = inlined_call_operand.hbm [shape: f32[128,512], index: 2, kind: input, shape index: {}]
  %s3 = inlined_call_operand.vmem [shape: f32[1,512], index: 3, kind: input, shape index: {}]
  %s4 = inlined_call_operand.hbm [shape: f32[128,256], index: 4, kind: input, shape index: {}]
  %s5 = inlined_call_operand.vmem [shape: f32[1,256], index: 5, kind: input, shape index: {}]
  %s6 = inlined_call_operand.hbm [shape: f32[256,256], index: 6, kind: input, shape index: {}]
  %s7 = inlined_call_operand.vmem [shape: f32[1,256], index: 7, kind: input, shape index: {}]
  %s8 = inlined_call_operand.hbm [shape: f32[256,128], index: 8, kind: input, shape index: {}]
  %s9 = inlined_call_operand.vmem [shape: f32[1,128], index: 9, kind: input, shape index: {}]
  %s10 = inlined_call_operand.hbm [shape: f32[2,128], index: 10, kind: output, shape index: {}]
  %s11 = sld [smem:[#allocation0]]
  $region70: #{combined_lstm_forward.1} parent=0
    _
  %s13 = ssub.s32 1, %s11
  %s14 = scalar_select 0, %s13, %s11
  $region1: #{combined_lstm_forward.1} parent=0
    #allocation2 [shape = 'u8[32768]{0}', space=vmem, size = 0x8000, scoped, tag = 'input window, operand 1, single buffered']
    #allocation3 [shape = 's32[1]{0}', space=sflag, size = 0x4, scoped, tag = 'scoped memory for combined_lstm_forward.1']
    #allocation4 [shape = 's32[1]{0}', space=sflag, size = 0x4, scoped, tag = 'scoped memory for combined_lstm_forward.1']
    #allocation5 [shape = 'u8[262144]{0}', space=vmem, size = 0x40000, scoped, tag = 'input window, operand 2, single buffered']
    #allocation6 [shape = 's32[1]{0}', space=sflag, size = 0x4, scoped, tag = 'scoped memory for combined_lstm_forward.1']
    #allocation7 [shape = 'u8[131072]{0}', space=vmem, size = 0x20000, scoped, tag = 'input window, operand 4, single buffered']
    #allocation8 [shape = 'u8[262144]{0}', space=vmem, size = 0x40000, scoped, tag = 'input window, operand 6, single buffered']
    #allocation9 [shape = 's32[1]{0}', space=sflag, size = 0x4, scoped, tag = 'scoped memory for combined_lstm_forward.1']
    #allocation10 [shape = 'u8[131072]{0}', space=vmem, size = 0x20000, scoped, tag = 'input window, operand 8, single buffered']
    #allocation11 [shape = 'u8[1024]{0}', space=vmem, size = 0x400, scoped, tag = 'output window, operand 0, single buffered']
    %15 = vsyncpa [#allocation3], 0
    %16 = vsyncpa [#allocation6], 0
    %17 = vsyncpa [#allocation9], 0
    %18 = vsyncpa [#allocation4], 0
    // Predicated region
    $region2: #{combined_lstm_forward.1} parent=1 // pred_check
      _
    $region3: #{combined_lstm_forward.1} parent=1 // pred_check_branch
      %20 = sbr.rel (0) target = $region5
    $region4: #{combined_lstm_forward.1} parent=1 // pred_region
      _
    $region5: #{combined_lstm_forward.1} parent=1 // pred_fallthru
      _
    // Predicated region
    $region6: #{combined_lstm_forward.1} parent=1 // pred_check
      _
    $region7: #{combined_lstm_forward.1} parent=1 // pred_check_branch
      %22 = sbr.rel (0) target = $region9
    $region8: #{combined_lstm_forward.1} parent=1 // pred_region
      %24 = vsyncadd [#allocation3], 0
      %s25 = sshll.u32 %s1, 4
      %s26 = int_to_ptr.hbm [resolvable:$true] %s25
      %s27 = sshll.u32 [#allocation2], 4
      %s28 = int_to_ptr.vmem [resolvable:$true] %s27
      %33 = dma.hbm_to_vmem [thread:$0]  %s26, 1024, %s28, [#allocation3], 512, 512, 32
    $region9: #{combined_lstm_forward.1} parent=1 // pred_fallthru
      _
    // Predicated region
    $region10: #{combined_lstm_forward.1} parent=1 // pred_check
      _
    $region11: #{combined_lstm_forward.1} parent=1 // pred_check_branch
      %35 = sbr.rel (0) target = $region13
    $region12: #{combined_lstm_forward.1} parent=1 // pred_region
      %37 = vsyncadd [#allocation6], 0
      %s38 = sshll.u32 %s2, 4
      %s39 = int_to_ptr.hbm [resolvable:$true] %s38
      %s40 = sshll.u32 [#allocation5], 4
      %s41 = int_to_ptr.vmem [resolvable:$true] %s40
      %46 = dma.hbm_to_vmem [thread:$0]  %s39, 8192, %s41, [#allocation6], 512, 512, 32
    $region13: #{combined_lstm_forward.1} parent=1 // pred_fallthru
      _
    // Predicated region
    $region14: #{combined_lstm_forward.1} parent=1 // pred_check
      _
    $region15: #{combined_lstm_forward.1} parent=1 // pred_check_branch
      %48 = sbr.rel (0) target = $region17
    $region16: #{combined_lstm_forward.1} parent=1 // pred_region
      _
    $region17: #{combined_lstm_forward.1} parent=1 // pred_fallthru
      _
    // Predicated region
    $region18: #{combined_lstm_forward.1} parent=1 // pred_check
      _
    $region19: #{combined_lstm_forward.1} parent=1 // pred_check_branch
      %50 = sbr.rel (0) target = $region21
    $region20: #{combined_lstm_forward.1} parent=1 // pred_region
      %52 = vsyncadd [#allocation6], 0
      %s53 = sshll.u32 %s4, 4
      %s54 = int_to_ptr.hbm [resolvable:$true] %s53
      %s55 = sshll.u32 [#allocation7], 4
      %s56 = int_to_ptr.vmem [resolvable:$true] %s55
      %61 = dma.hbm_to_vmem [thread:$0]  %s54, 4096, %s56, [#allocation6], 256, 256, 16
    $region21: #{combined_lstm_forward.1} parent=1 // pred_fallthru
      _
    // Predicated region
    $region22: #{combined_lstm_forward.1} parent=1 // pred_check
      _
    $region23: #{combined_lstm_forward.1} parent=1 // pred_check_branch
      %63 = sbr.rel (0) target = $region25
    $region24: #{combined_lstm_forward.1} parent=1 // pred_region
      _
    $region25: #{combined_lstm_forward.1} parent=1 // pred_fallthru
      _
    // Predicated region
    $region26: #{combined_lstm_forward.1} parent=1 // pred_check
      _
    $region27: #{combined_lstm_forward.1} parent=1 // pred_check_branch
      %65 = sbr.rel (0) target = $region29
    $region28: #{combined_lstm_forward.1} parent=1 // pred_region
      %67 = vsyncadd [#allocation9], 0
      %s68 = sshll.u32 %s6, 4
      %s69 = int_to_ptr.hbm [resolvable:$true] %s68
      %s70 = sshll.u32 [#allocation8], 4
      %s71 = int_to_ptr.vmem [resolvable:$true] %s70
      %76 = dma.hbm_to_vmem [thread:$0]  %s69, 8192, %s71, [#allocation9], 256, 256, 16
    $region29: #{combined_lstm_forward.1} parent=1 // pred_fallthru
      _
    // Predicated region
    $region30: #{combined_lstm_forward.1} parent=1 // pred_check
      _
    $region31: #{combined_lstm_forward.1} parent=1 // pred_check_branch
      %78 = sbr.rel (0) target = $region33
    $region32: #{combined_lstm_forward.1} parent=1 // pred_region
      _
    $region33: #{combined_lstm_forward.1} parent=1 // pred_fallthru
      _
    // Predicated region
    $region34: #{combined_lstm_forward.1} parent=1 // pred_check
      _
    $region35: #{combined_lstm_forward.1} parent=1 // pred_check_branch
      %80 = sbr.rel (0) target = $region37
    $region36: #{combined_lstm_forward.1} parent=1 // pred_region
      %82 = vsyncadd [#allocation9], 0
      %s83 = sshll.u32 %s8, 4
      %s84 = int_to_ptr.hbm [resolvable:$true] %s83
      %s85 = sshll.u32 [#allocation10], 4
      %s86 = int_to_ptr.vmem [resolvable:$true] %s85
      %91 = dma.hbm_to_vmem [thread:$0]  %s84, 4096, %s86, [#allocation9], 128, 128, 8
    $region37: #{combined_lstm_forward.1} parent=1 // pred_fallthru
      _
    // Predicated region
    $region38: #{combined_lstm_forward.1} parent=1 // pred_check
      _
    $region39: #{combined_lstm_forward.1} parent=1 // pred_check_branch
      %93 = sbr.rel (0) target = $region41
    $region40: #{combined_lstm_forward.1} parent=1 // pred_region
      _
    $region41: #{combined_lstm_forward.1} parent=1 // pred_fallthru
      _
    // Predicated region
    $region42: #{combined_lstm_forward.1} parent=1 // pred_check
      _
    $region43: #{combined_lstm_forward.1} parent=1 // pred_check_branch
      %95 = sbr.rel (0) target = $region45
    $region44: #{combined_lstm_forward.1} parent=1 // pred_region
      %97 = dma.done [#allocation3], 1024
    $region45: #{combined_lstm_forward.1} parent=1 // pred_fallthru
      _
    // Predicated region
    $region46: #{combined_lstm_forward.1} parent=1 // pred_check
      _
    $region47: #{combined_lstm_forward.1} parent=1 // pred_check_branch
      %99 = sbr.rel (0) target = $region49
    $region48: #{combined_lstm_forward.1} parent=1 // pred_region
      %101 = dma.done [#allocation6], 8192
    $region49: #{combined_lstm_forward.1} parent=1 // pred_fallthru
      _
    // Predicated region
    $region50: #{combined_lstm_forward.1} parent=1 // pred_check
      _
    $region51: #{combined_lstm_forward.1} parent=1 // pred_check_branch
      %103 = sbr.rel (0) target = $region53
    $region52: #{combined_lstm_forward.1} parent=1 // pred_region
      %105 = dma.done [#allocation6], 4096
    $region53: #{combined_lstm_forward.1} parent=1 // pred_fallthru
      _
    // Predicated region
    $region54: #{combined_lstm_forward.1} parent=1 // pred_check
      _
    $region55: #{combined_lstm_forward.1} parent=1 // pred_check_branch
      %107 = sbr.rel (0) target = $region57
    $region56: #{combined_lstm_forward.1} parent=1 // pred_region
      %109 = dma.done [#allocation9], 8192
    $region57: #{combined_lstm_forward.1} parent=1 // pred_fallthru
      _
    // Predicated region
    $region58: #{combined_lstm_forward.1} parent=1 // pred_check
      _
    $region59: #{combined_lstm_forward.1} parent=1 // pred_check_branch
      %111 = sbr.rel (0) target = $region61
    $region60: #{combined_lstm_forward.1} parent=1 // pred_region
      %113 = dma.done [#allocation9], 4096
    $region61: #{combined_lstm_forward.1} parent=1 // pred_fallthru
      _
    %v114 = vld [vmem:[%s0] sm:$0xff]
    %v115 = vld [vmem:[%s0 + $0x8] sm:$0xff]
    %v116 = vld [vmem:[#allocation5] sm:$0xff]
    %v117 = vld [vmem:[#allocation5 + $0x8] sm:$0xff]
    %v118 = vld [vmem:[#allocation5 + $0x10] sm:$0xff]
    %v119 = vld [vmem:[#allocation5 + $0x18] sm:$0xff]
    %v120 = vld [vmem:[#allocation5 + $0x20] sm:$0xff]
    %v121 = vld [vmem:[#allocation5 + $0x28] sm:$0xff]
    %v122 = vld [vmem:[#allocation5 + $0x30] sm:$0xff]
    %v123 = vld [vmem:[#allocation5 + $0x38] sm:$0xff]
    %v124 = vld [vmem:[#allocation5 + $0x40] sm:$0xff]
    %v125 = vld [vmem:[#allocation5 + $0x48] sm:$0xff]
    %v126 = vld [vmem:[#allocation5 + $0x50] sm:$0xff]
    %v127 = vld [vmem:[#allocation5 + $0x58] sm:$0xff]
    %v128 = vld [vmem:[#allocation5 + $0x60] sm:$0xff]
    %v129 = vld [vmem:[#allocation5 + $0x68] sm:$0xff]
    %v130 = vld [vmem:[#allocation5 + $0x70] sm:$0xff]
    %v131 = vld [vmem:[#allocation5 + $0x78] sm:$0xff]
    %v132 = vld [vmem:[#allocation5 + $0x80] sm:$0xff]
    %v133 = vld [vmem:[#allocation5 + $0x88] sm:$0xff]
    %v134 = vld [vmem:[#allocation5 + $0x90] sm:$0xff]
    %v135 = vld [vmem:[#allocation5 + $0x98] sm:$0xff]
    %v136 = vld [vmem:[#allocation5 + $0xa0] sm:$0xff]
    %v137 = vld [vmem:[#allocation5 + $0xa8] sm:$0xff]
    %v138 = vld [vmem:[#allocation5 + $0xb0] sm:$0xff]
    %v139 = vld [vmem:[#allocation5 + $0xb8] sm:$0xff]
    %v140 = vld [vmem:[#allocation5 + $0xc0] sm:$0xff]
    %v141 = vld [vmem:[#allocation5 + $0xc8] sm:$0xff]
    %v142 = vld [vmem:[#allocation5 + $0xd0] sm:$0xff]
    %v143 = vld [vmem:[#allocation5 + $0xd8] sm:$0xff]
    %v144 = vld [vmem:[#allocation5 + $0xe0] sm:$0xff]
    %v145 = vld [vmem:[#allocation5 + $0xe8] sm:$0xff]
    %v146 = vld [vmem:[#allocation5 + $0xf0] sm:$0xff]
    %v147 = vld [vmem:[#allocation5 + $0xf8] sm:$0xff]
    %v148 = vld [vmem:[#allocation5 + $0x100] sm:$0xff]
    %v149 = vld [vmem:[#allocation5 + $0x108] sm:$0xff]
    %v150 = vld [vmem:[#allocation5 + $0x110] sm:$0xff]
    %v151 = vld [vmem:[#allocation5 + $0x118] sm:$0xff]
    %v152 = vld [vmem:[#allocation5 + $0x120] sm:$0xff]
    %v153 = vld [vmem:[#allocation5 + $0x128] sm:$0xff]
    %v154 = vld [vmem:[#allocation5 + $0x130] sm:$0xff]
    %v155 = vld [vmem:[#allocation5 + $0x138] sm:$0xff]
    %v156 = vld [vmem:[#allocation5 + $0x140] sm:$0xff]
    %v157 = vld [vmem:[#allocation5 + $0x148] sm:$0xff]
    %v158 = vld [vmem:[#allocation5 + $0x150] sm:$0xff]
    %v159 = vld [vmem:[#allocation5 + $0x158] sm:$0xff]
    %v160 = vld [vmem:[#allocation5 + $0x160] sm:$0xff]
    %v161 = vld [vmem:[#allocation5 + $0x168] sm:$0xff]
    %v162 = vld [vmem:[#allocation5 + $0x170] sm:$0xff]
    %v163 = vld [vmem:[#allocation5 + $0x178] sm:$0xff]
    %v164 = vld [vmem:[#allocation5 + $0x180] sm:$0xff]
    %v165 = vld [vmem:[#allocation5 + $0x188] sm:$0xff]
    %v166 = vld [vmem:[#allocation5 + $0x190] sm:$0xff]
    %v167 = vld [vmem:[#allocation5 + $0x198] sm:$0xff]
    %v168 = vld [vmem:[#allocation5 + $0x1a0] sm:$0xff]
    %v169 = vld [vmem:[#allocation5 + $0x1a8] sm:$0xff]
    %v170 = vld [vmem:[#allocation5 + $0x1b0] sm:$0xff]
    %v171 = vld [vmem:[#allocation5 + $0x1b8] sm:$0xff]
    %v172 = vld [vmem:[#allocation5 + $0x1c0] sm:$0xff]
    %v173 = vld [vmem:[#allocation5 + $0x1c8] sm:$0xff]
    %v174 = vld [vmem:[#allocation5 + $0x1d0] sm:$0xff]
    %v175 = vld [vmem:[#allocation5 + $0x1d8] sm:$0xff]
    %v176 = vld [vmem:[#allocation5 + $0x1e0] sm:$0xff]
    %v177 = vld [vmem:[#allocation5 + $0x1e8] sm:$0xff]
    %v178 = vld [vmem:[#allocation5 + $0x1f0] sm:$0xff]
    %v179 = vld [vmem:[#allocation5 + $0x1f8] sm:$0xff]
    %v180 = vld [vmem:[#allocation2] sm:$0xff]
    %v181 = vld [vmem:[#allocation2 + $0x8] sm:$0xff]
    %v182 = vld [vmem:[#allocation2 + $0x10] sm:$0xff]
    %v183 = vld [vmem:[#allocation2 + $0x18] sm:$0xff]
    %v184 = vld [vmem:[#allocation2 + $0x20] sm:$0xff]
    %v185 = vld [vmem:[#allocation2 + $0x28] sm:$0xff]
    %v186 = vld [vmem:[#allocation2 + $0x30] sm:$0xff]
    %v187 = vld [vmem:[#allocation2 + $0x38] sm:$0xff]
    %v188 = vld [vmem:[%s3] sm:$0xf]
    %v190 = vperm.slane %v188, 0
    %v191 = vperm.slane %v188, 1
    %v192 = vperm.slane %v188, 2
    %v193 = vperm.slane %v188, 3
    %vm198 = vcmask 130048
    %v200 = vsel %vm198, %v114, 0
    %v203 = vsel %vm198, %v115, 0
    %205 = vmatpush.msra.mxu0 0.0
    %206 = vmatpush.msra.mxu0 0.0
    %207 = vmatpush.msra.mxu0 0.0
    %208 = vmatpush.msra.mxu0 0.0
    %209 = vmatpush.msra.mxu0 0.0
    %210 = vmatpush.msra.mxu0 0.0
    %211 = vmatpush.msra.mxu0 0.0
    %212 = vmatpush.msra.mxu0 0.0
    %213 = vmatpush.msra.mxu0 0.0
    %214 = vmatpush.msra.mxu0 0.0
    %215 = vmatpush.msra.mxu0 0.0
    %216 = vmatpush.msra.mxu0 0.0
    %217 = vmatpush.msra.mxu0 0.0
    %218 = vmatpush.msra.mxu0 0.0
    %219 = vmatpush.msra.mxu0 %v184
    %220 = vmatpush.msra.mxu0 %v180
    %221 = vmatmul.f32.gmra.mxu0 %v200
    %v222 = vpop.f32.mrf.mxu0
    %v223 = vadd.f32 %v190, %v222
    %224 = vmatmul.f32.gmra.mxu0 %v203
    %v225 = vpop.f32.mrf.mxu0
    %v226 = vadd.f32 %v190, %v225
    %227 = vdwg.mxu0
    %228 = vmatpush.msra.mxu0 0.0
    %229 = vmatpush.msra.mxu0 0.0
    %230 = vmatpush.msra.mxu0 0.0
    %231 = vmatpush.msra.mxu0 0.0
    %232 = vmatpush.msra.mxu0 0.0
    %233 = vmatpush.msra.mxu0 0.0
    %234 = vmatpush.msra.mxu0 0.0
    %235 = vmatpush.msra.mxu0 0.0
    %236 = vmatpush.msra.mxu0 0.0
    %237 = vmatpush.msra.mxu0 0.0
    %238 = vmatpush.msra.mxu0 0.0
    %239 = vmatpush.msra.mxu0 0.0
    %240 = vmatpush.msra.mxu0 0.0
    %241 = vmatpush.msra.mxu0 0.0
    %242 = vmatpush.msra.mxu0 %v185
    %243 = vmatpush.msra.mxu0 %v181
    %244 = vmatmul.f32.gmra.mxu0 %v200
    %v245 = vpop.f32.mrf.mxu0
    %v246 = vadd.f32 %v191, %v245
    %247 = vmatmul.f32.gmra.mxu0 %v203
    %v248 = vpop.f32.mrf.mxu0
    %v249 = vadd.f32 %v191, %v248
    %250 = vdwg.mxu0
    %251 = vmatpush.msra.mxu0 0.0
    %252 = vmatpush.msra.mxu0 0.0
    %253 = vmatpush.msra.mxu0 0.0
    %254 = vmatpush.msra.mxu0 0.0
    %255 = vmatpush.msra.mxu0 0.0
    %256 = vmatpush.msra.mxu0 0.0
    %257 = vmatpush.msra.mxu0 0.0
    %258 = vmatpush.msra.mxu0 0.0
    %259 = vmatpush.msra.mxu0 0.0
    %260 = vmatpush.msra.mxu0 0.0
    %261 = vmatpush.msra.mxu0 0.0
    %262 = vmatpush.msra.mxu0 0.0
    %263 = vmatpush.msra.mxu0 0.0
    %264 = vmatpush.msra.mxu0 0.0
    %265 = vmatpush.msra.mxu0 %v186
    %266 = vmatpush.msra.mxu0 %v182
    %267 = vmatmul.f32.gmra.mxu0 %v200
    %v268 = vpop.f32.mrf.mxu0
    %v269 = vadd.f32 %v192, %v268
    %270 = vmatmul.f32.gmra.mxu0 %v203
    %v271 = vpop.f32.mrf.mxu0
    %v272 = vadd.f32 %v192, %v271
    %273 = vdwg.mxu0
    %274 = vmatpush.msra.mxu0 0.0
    %275 = vmatpush.msra.mxu0 0.0
    %276 = vmatpush.msra.mxu0 0.0
    %277 = vmatpush.msra.mxu0 0.0
    %278 = vmatpush.msra.mxu0 0.0
    %279 = vmatpush.msra.mxu0 0.0
    %280 = vmatpush.msra.mxu0 0.0
    %281 = vmatpush.msra.mxu0 0.0
    %282 = vmatpush.msra.mxu0 0.0
    %283 = vmatpush.msra.mxu0 0.0
    %284 = vmatpush.msra.mxu0 0.0
    %285 = vmatpush.msra.mxu0 0.0
    %286 = vmatpush.msra.mxu0 0.0
    %287 = vmatpush.msra.mxu0 0.0
    %288 = vmatpush.msra.mxu0 %v187
    %289 = vmatpush.msra.mxu0 %v183
    %290 = vmatmul.f32.gmra.mxu0 %v200
    %v291 = vpop.f32.mrf.mxu0
    %v292 = vadd.f32 %v193, %v291
    %293 = vmatmul.f32.gmra.mxu0 %v203
    %v294 = vpop.f32.mrf.mxu0
    %v295 = vadd.f32 %v193, %v294
    %296 = vdwg.mxu0
    %297 = vmatpush.msra.mxu0 %v176
    %298 = vmatpush.msra.mxu0 %v172
    %299 = vmatpush.msra.mxu0 %v168
    %300 = vmatpush.msra.mxu0 %v164
    %301 = vmatpush.msra.mxu0 %v160
    %302 = vmatpush.msra.mxu0 %v156
    %303 = vmatpush.msra.mxu0 %v152
    %304 = vmatpush.msra.mxu0 %v148
    %305 = vmatpush.msra.mxu0 %v144
    %306 = vmatpush.msra.mxu0 %v140
    %307 = vmatpush.msra.mxu0 %v136
    %308 = vmatpush.msra.mxu0 %v132
    %309 = vmatpush.msra.mxu0 %v128
    %310 = vmatpush.msra.mxu0 %v124
    %311 = vmatpush.msra.mxu0 %v120
    %312 = vmatpush.msra.mxu0 %v116
    %313 = vmatmul.f32.gmra.mxu0 0.0
    %v314 = vpop.f32.mrf.mxu0
    %v315 = vadd.f32 0.0, %v314
    %316 = vdwg.mxu0
    %317 = vmatpush.msra.mxu0 %v177
    %318 = vmatpush.msra.mxu0 %v173
    %319 = vmatpush.msra.mxu0 %v169
    %320 = vmatpush.msra.mxu0 %v165
    %321 = vmatpush.msra.mxu0 %v161
    %322 = vmatpush.msra.mxu0 %v157
    %323 = vmatpush.msra.mxu0 %v153
    %324 = vmatpush.msra.mxu0 %v149
    %325 = vmatpush.msra.mxu0 %v145
    %326 = vmatpush.msra.mxu0 %v141
    %327 = vmatpush.msra.mxu0 %v137
    %328 = vmatpush.msra.mxu0 %v133
    %329 = vmatpush.msra.mxu0 %v129
    %330 = vmatpush.msra.mxu0 %v125
    %331 = vmatpush.msra.mxu0 %v121
    %332 = vmatpush.msra.mxu0 %v117
    %333 = vmatmul.f32.gmra.mxu0 0.0
    %v334 = vpop.f32.mrf.mxu0
    %v335 = vadd.f32 0.0, %v334
    %336 = vdwg.mxu0
    %337 = vmatpush.msra.mxu0 %v178
    %338 = vmatpush.msra.mxu0 %v174
    %339 = vmatpush.msra.mxu0 %v170
    %340 = vmatpush.msra.mxu0 %v166
    %341 = vmatpush.msra.mxu0 %v162
    %342 = vmatpush.msra.mxu0 %v158
    %343 = vmatpush.msra.mxu0 %v154
    %344 = vmatpush.msra.mxu0 %v150
    %345 = vmatpush.msra.mxu0 %v146
    %346 = vmatpush.msra.mxu0 %v142
    %347 = vmatpush.msra.mxu0 %v138
    %348 = vmatpush.msra.mxu0 %v134
    %349 = vmatpush.msra.mxu0 %v130
    %350 = vmatpush.msra.mxu0 %v126
    %351 = vmatpush.msra.mxu0 %v122
    %352 = vmatpush.msra.mxu0 %v118
    %353 = vmatmul.f32.gmra.mxu0 0.0
    %v354 = vpop.f32.mrf.mxu0
    %v355 = vadd.f32 0.0, %v354
    %356 = vdwg.mxu0
    %357 = vmatpush.msra.mxu0 %v179
    %358 = vmatpush.msra.mxu0 %v175
    %359 = vmatpush.msra.mxu0 %v171
    %360 = vmatpush.msra.mxu0 %v167
    %361 = vmatpush.msra.mxu0 %v163
    %362 = vmatpush.msra.mxu0 %v159
    %363 = vmatpush.msra.mxu0 %v155
    %364 = vmatpush.msra.mxu0 %v151
    %365 = vmatpush.msra.mxu0 %v147
    %366 = vmatpush.msra.mxu0 %v143
    %367 = vmatpush.msra.mxu0 %v139
    %368 = vmatpush.msra.mxu0 %v135
    %369 = vmatpush.msra.mxu0 %v131
    %370 = vmatpush.msra.mxu0 %v127
    %371 = vmatpush.msra.mxu0 %v123
    %372 = vmatpush.msra.mxu0 %v119
    %373 = vmatmul.f32.gmra.mxu0 0.0
    %v374 = vpop.f32.mrf.mxu0
    %v375 = vadd.f32 0.0, %v374
    %376 = vdwg.mxu0
    %v377 = vadd.f32 %v223, %v315
    %v378 = vadd.f32 %v246, %v335
    %v379 = vadd.f32 %v269, %v355
    %v380 = vadd.f32 %v292, %v375
    %v381 = vxor.u32 %v377, 2147483648
    %v382 = vxor.u32 %v378, 2147483648
    %v383 = vxor.u32 %v379, 2147483648
    %v384 = vmul.f32 %v381, 1.442695
    %v385 = vpow.pop %v384
    %v386 = vmul.f32 %v382, 1.442695
    %v387 = vpow.pop %v386
    %v388 = vmul.f32 %v383, 1.442695
    %v389 = vpow.pop %v388
    %v390 = vadd.f32 %v385, 1.0
    %v391 = vadd.f32 %v387, 1.0
    %v392 = vadd.f32 %v389, 1.0
    %v393 = vrcp.pop %v390
    %v394 = vmul.f32 %v390, %v393
    %v395 = vsub.f32 1.0, %v394
    %v396 = vmul.f32 %v393, %v395
    %v397 = vadd.f32 %v393, %v396
    %vm398 = vweird.f32 %v390
    %vm399 = vweird.f32 %v393
    %vm400 = vmor %vm398, %vm399
    %v401 = vsel %vm400, %v393, %v397
    %v402 = vand.u32 2147483647, %v390
    %vm403 = vcmp.eq.f32.partialorder %v402, 8.507059e+37
    %v404 = vand.u32 %v390, 2147483648
    %v405 = vor.u32 1.1754944e-38, %v404
    %v406 = vsel %vm403, %v405, %v401
    %v407 = vmul.f32 1.0, %v406
    %v408 = vrcp.pop %v391
    %v409 = vmul.f32 %v391, %v408
    %v410 = vsub.f32 1.0, %v409
    %v411 = vmul.f32 %v408, %v410
    %v412 = vadd.f32 %v408, %v411
    %vm413 = vweird.f32 %v391
    %vm414 = vweird.f32 %v408
    %vm415 = vmor %vm413, %vm414
    %v416 = vsel %vm415, %v408, %v412
    %v417 = vand.u32 2147483647, %v391
    %vm418 = vcmp.eq.f32.partialorder %v417, 8.507059e+37
    %v419 = vand.u32 %v391, 2147483648
    %v420 = vor.u32 1.1754944e-38, %v419
    %v421 = vsel %vm418, %v420, %v416
    %v422 = vmul.f32 1.0, %v421
    %v423 = vrcp.pop %v392
    %v424 = vmul.f32 %v392, %v423
    %v425 = vsub.f32 1.0, %v424
    %v426 = vmul.f32 %v423, %v425
    %v427 = vadd.f32 %v423, %v426
    %vm428 = vweird.f32 %v392
    %vm429 = vweird.f32 %v423
    %vm430 = vmor %vm428, %vm429
    %v431 = vsel %vm430, %v423, %v427
    %v432 = vand.u32 2147483647, %v392
    %vm433 = vcmp.eq.f32.partialorder %v432, 8.507059e+37
    %v434 = vand.u32 %v392, 2147483648
    %v435 = vor.u32 1.1754944e-38, %v434
    %v436 = vsel %vm433, %v435, %v431
    %v437 = vmul.f32 1.0, %v436
    %v438 = vtanh.pop %v380
    %v439 = vmul.f32 %v422, 0.0
    %v440 = vmul.f32 %v407, %v438
    %v441 = vadd.f32 %v439, %v440
    %v442 = vtanh.pop %v441
    %v443 = vmul.f32 %v437, %v442
    %444 = vmatpush.msra.mxu0 %v176
    %445 = vmatpush.msra.mxu0 %v172
    %446 = vmatpush.msra.mxu0 %v168
    %447 = vmatpush.msra.mxu0 %v164
    %448 = vmatpush.msra.mxu0 %v160
    %449 = vmatpush.msra.mxu0 %v156
    %450 = vmatpush.msra.mxu0 %v152
    %451 = vmatpush.msra.mxu0 %v148
    %452 = vmatpush.msra.mxu0 %v144
    %453 = vmatpush.msra.mxu0 %v140
    %454 = vmatpush.msra.mxu0 %v136
    %455 = vmatpush.msra.mxu0 %v132
    %456 = vmatpush.msra.mxu0 %v128
    %457 = vmatpush.msra.mxu0 %v124
    %458 = vmatpush.msra.mxu0 %v120
    %459 = vmatpush.msra.mxu0 %v116
    %460 = vmatmul.f32.gmra.mxu0 %v443
    %v461 = vpop.f32.mrf.mxu0
    %v462 = vadd.f32 0.0, %v461
    %463 = vdwg.mxu0
    %464 = vmatpush.msra.mxu0 %v177
    %465 = vmatpush.msra.mxu0 %v173
    %466 = vmatpush.msra.mxu0 %v169
    %467 = vmatpush.msra.mxu0 %v165
    %468 = vmatpush.msra.mxu0 %v161
    %469 = vmatpush.msra.mxu0 %v157
    %470 = vmatpush.msra.mxu0 %v153
    %471 = vmatpush.msra.mxu0 %v149
    %472 = vmatpush.msra.mxu0 %v145
    %473 = vmatpush.msra.mxu0 %v141
    %474 = vmatpush.msra.mxu0 %v137
    %475 = vmatpush.msra.mxu0 %v133
    %476 = vmatpush.msra.mxu0 %v129
    %477 = vmatpush.msra.mxu0 %v125
    %478 = vmatpush.msra.mxu0 %v121
    %479 = vmatpush.msra.mxu0 %v117
    %480 = vmatmul.f32.gmra.mxu0 %v443
    %v481 = vpop.f32.mrf.mxu0
    %v482 = vadd.f32 0.0, %v481
    %483 = vdwg.mxu0
    %484 = vmatpush.msra.mxu0 %v178
    %485 = vmatpush.msra.mxu0 %v174
    %486 = vmatpush.msra.mxu0 %v170
    %487 = vmatpush.msra.mxu0 %v166
    %488 = vmatpush.msra.mxu0 %v162
    %489 = vmatpush.msra.mxu0 %v158
    %490 = vmatpush.msra.mxu0 %v154
    %491 = vmatpush.msra.mxu0 %v150
    %492 = vmatpush.msra.mxu0 %v146
    %493 = vmatpush.msra.mxu0 %v142
    %494 = vmatpush.msra.mxu0 %v138
    %495 = vmatpush.msra.mxu0 %v134
    %496 = vmatpush.msra.mxu0 %v130
    %497 = vmatpush.msra.mxu0 %v126
    %498 = vmatpush.msra.mxu0 %v122
    %499 = vmatpush.msra.mxu0 %v118
    %500 = vmatmul.f32.gmra.mxu0 %v443
    %v501 = vpop.f32.mrf.mxu0
    %v502 = vadd.f32 0.0, %v501
    %503 = vdwg.mxu0
    %504 = vmatpush.msra.mxu0 %v179
    %505 = vmatpush.msra.mxu0 %v175
    %506 = vmatpush.msra.mxu0 %v171
    %507 = vmatpush.msra.mxu0 %v167
    %508 = vmatpush.msra.mxu0 %v163
    %509 = vmatpush.msra.mxu0 %v159
    %510 = vmatpush.msra.mxu0 %v155
    %511 = vmatpush.msra.mxu0 %v151
    %512 = vmatpush.msra.mxu0 %v147
    %513 = vmatpush.msra.mxu0 %v143
    %514 = vmatpush.msra.mxu0 %v139
    %515 = vmatpush.msra.mxu0 %v135
    %516 = vmatpush.msra.mxu0 %v131
    %517 = vmatpush.msra.mxu0 %v127
    %518 = vmatpush.msra.mxu0 %v123
    %519 = vmatpush.msra.mxu0 %v119
    %520 = vmatmul.f32.gmra.mxu0 %v443
    %v521 = vpop.f32.mrf.mxu0
    %v522 = vadd.f32 0.0, %v521
    %523 = vdwg.mxu0
    %v528 = vrot.slane %v462, 6
    %v529 = vrot.slane %v482, 6
    %v530 = vrot.slane %v502, 6
    %v531 = vrot.slane %v522, 6
    %v536 = vadd.f32 %v223, %v528
    %v537 = vadd.f32 %v246, %v529
    %v538 = vadd.f32 %v269, %v530
    %v539 = vadd.f32 %v292, %v531
    %v540 = vxor.u32 %v536, 2147483648
    %v541 = vxor.u32 %v537, 2147483648
    %v542 = vxor.u32 %v538, 2147483648
    %v543 = vmul.f32 %v540, 1.442695
    %v544 = vpow.pop %v543
    %v545 = vmul.f32 %v541, 1.442695
    %v546 = vpow.pop %v545
    %v547 = vmul.f32 %v542, 1.442695
    %v548 = vpow.pop %v547
    %v549 = vadd.f32 %v544, 1.0
    %v550 = vadd.f32 %v546, 1.0
    %v551 = vadd.f32 %v548, 1.0
    %v552 = vrcp.pop %v549
    %v553 = vmul.f32 %v549, %v552
    %v554 = vsub.f32 1.0, %v553
    %v555 = vmul.f32 %v552, %v554
    %v556 = vadd.f32 %v552, %v555
    %vm557 = vweird.f32 %v549
    %vm558 = vweird.f32 %v552
    %vm559 = vmor %vm557, %vm558
    %v560 = vsel %vm559, %v552, %v556
    %v561 = vand.u32 2147483647, %v549
    %vm562 = vcmp.eq.f32.partialorder %v561, 8.507059e+37
    %v563 = vand.u32 %v549, 2147483648
    %v564 = vor.u32 1.1754944e-38, %v563
    %v565 = vsel %vm562, %v564, %v560
    %v566 = vmul.f32 1.0, %v565
    %v567 = vrcp.pop %v550
    %v568 = vmul.f32 %v550, %v567
    %v569 = vsub.f32 1.0, %v568
    %v570 = vmul.f32 %v567, %v569
    %v571 = vadd.f32 %v567, %v570
    %vm572 = vweird.f32 %v550
    %vm573 = vweird.f32 %v567
    %vm574 = vmor %vm572, %vm573
    %v575 = vsel %vm574, %v567, %v571
    %v576 = vand.u32 2147483647, %v550
    %vm577 = vcmp.eq.f32.partialorder %v576, 8.507059e+37
    %v578 = vand.u32 %v550, 2147483648
    %v579 = vor.u32 1.1754944e-38, %v578
    %v580 = vsel %vm577, %v579, %v575
    %v581 = vmul.f32 1.0, %v580
    %v582 = vrcp.pop %v551
    %v583 = vmul.f32 %v551, %v582
    %v584 = vsub.f32 1.0, %v583
    %v585 = vmul.f32 %v582, %v584
    %v586 = vadd.f32 %v582, %v585
    %vm587 = vweird.f32 %v551
    %vm588 = vweird.f32 %v582
    %vm589 = vmor %vm587, %vm588
    %v590 = vsel %vm589, %v582, %v586
    %v591 = vand.u32 2147483647, %v551
    %vm592 = vcmp.eq.f32.partialorder %v591, 8.507059e+37
    %v593 = vand.u32 %v551, 2147483648
    %v594 = vor.u32 1.1754944e-38, %v593
    %v595 = vsel %vm592, %v594, %v590
    %v596 = vmul.f32 1.0, %v595
    %v597 = vtanh.pop %v539
    %v599 = vrot.slane %v441, 6
    %v601 = vmul.f32 %v581, %v599
    %v602 = vmul.f32 %v566, %v597
    %v603 = vadd.f32 %v601, %v602
    %v604 = vtanh.pop %v603
    %v605 = vmul.f32 %v596, %v604
    %v607 = vrot.slane %v605, 2
    %609 = vmatpush.msra.mxu0 %v176
    %610 = vmatpush.msra.mxu0 %v172
    %611 = vmatpush.msra.mxu0 %v168
    %612 = vmatpush.msra.mxu0 %v164
    %613 = vmatpush.msra.mxu0 %v160
    %614 = vmatpush.msra.mxu0 %v156
    %615 = vmatpush.msra.mxu0 %v152
    %616 = vmatpush.msra.mxu0 %v148
    %617 = vmatpush.msra.mxu0 %v144
    %618 = vmatpush.msra.mxu0 %v140
    %619 = vmatpush.msra.mxu0 %v136
    %620 = vmatpush.msra.mxu0 %v132
    %621 = vmatpush.msra.mxu0 %v128
    %622 = vmatpush.msra.mxu0 %v124
    %623 = vmatpush.msra.mxu0 %v120
    %624 = vmatpush.msra.mxu0 %v116
    %625 = vmatmul.f32.gmra.mxu0 %v607
    %v626 = vpop.f32.mrf.mxu0
    %v627 = vadd.f32 0.0, %v626
    %628 = vdwg.mxu0
    %629 = vmatpush.msra.mxu0 %v177
    %630 = vmatpush.msra.mxu0 %v173
    %631 = vmatpush.msra.mxu0 %v169
    %632 = vmatpush.msra.mxu0 %v165
    %633 = vmatpush.msra.mxu0 %v161
    %634 = vmatpush.msra.mxu0 %v157
    %635 = vmatpush.msra.mxu0 %v153
    %636 = vmatpush.msra.mxu0 %v149
    %637 = vmatpush.msra.mxu0 %v145
    %638 = vmatpush.msra.mxu0 %v141
    %639 = vmatpush.msra.mxu0 %v137
    %640 = vmatpush.msra.mxu0 %v133
    %641 = vmatpush.msra.mxu0 %v129
    %642 = vmatpush.msra.mxu0 %v125
    %643 = vmatpush.msra.mxu0 %v121
    %644 = vmatpush.msra.mxu0 %v117
    %645 = vmatmul.f32.gmra.mxu0 %v607
    %v646 = vpop.f32.mrf.mxu0
    %v647 = vadd.f32 0.0, %v646
    %648 = vdwg.mxu0
    %649 = vmatpush.msra.mxu0 %v178
    %650 = vmatpush.msra.mxu0 %v174
    %651 = vmatpush.msra.mxu0 %v170
    %652 = vmatpush.msra.mxu0 %v166
    %653 = vmatpush.msra.mxu0 %v162
    %654 = vmatpush.msra.mxu0 %v158
    %655 = vmatpush.msra.mxu0 %v154
    %656 = vmatpush.msra.mxu0 %v150
    %657 = vmatpush.msra.mxu0 %v146
    %658 = vmatpush.msra.mxu0 %v142
    %659 = vmatpush.msra.mxu0 %v138
    %660 = vmatpush.msra.mxu0 %v134
    %661 = vmatpush.msra.mxu0 %v130
    %662 = vmatpush.msra.mxu0 %v126
    %663 = vmatpush.msra.mxu0 %v122
    %664 = vmatpush.msra.mxu0 %v118
    %665 = vmatmul.f32.gmra.mxu0 %v607
    %v666 = vpop.f32.mrf.mxu0
    %v667 = vadd.f32 0.0, %v666
    %668 = vdwg.mxu0
    %669 = vmatpush.msra.mxu0 %v179
    %670 = vmatpush.msra.mxu0 %v175
    %671 = vmatpush.msra.mxu0 %v171
    %672 = vmatpush.msra.mxu0 %v167
    %673 = vmatpush.msra.mxu0 %v163
    %674 = vmatpush.msra.mxu0 %v159
    %675 = vmatpush.msra.mxu0 %v155
    %676 = vmatpush.msra.mxu0 %v151
    %677 = vmatpush.msra.mxu0 %v147
    %678 = vmatpush.msra.mxu0 %v143
    %679 = vmatpush.msra.mxu0 %v139
    %680 = vmatpush.msra.mxu0 %v135
    %681 = vmatpush.msra.mxu0 %v131
    %682 = vmatpush.msra.mxu0 %v127
    %683 = vmatpush.msra.mxu0 %v123
    %684 = vmatpush.msra.mxu0 %v119
    %685 = vmatmul.f32.gmra.mxu0 %v607
    %v686 = vpop.f32.mrf.mxu0
    %v687 = vadd.f32 0.0, %v686
    %688 = vdwg.mxu0
    %v693 = vrot.slane %v627, 4
    %v694 = vrot.slane %v647, 4
    %v695 = vrot.slane %v667, 4
    %v696 = vrot.slane %v687, 4
    %v701 = vadd.f32 %v223, %v693
    %v702 = vadd.f32 %v246, %v694
    %v703 = vadd.f32 %v269, %v695
    %v704 = vadd.f32 %v292, %v696
    %v705 = vxor.u32 %v701, 2147483648
    %v706 = vxor.u32 %v702, 2147483648
    %v707 = vxor.u32 %v703, 2147483648
    %v708 = vmul.f32 %v705, 1.442695
    %v709 = vpow.pop %v708
    %v710 = vmul.f32 %v706, 1.442695
    %v711 = vpow.pop %v710
    %v712 = vmul.f32 %v707, 1.442695
    %v713 = vpow.pop %v712
    %v714 = vadd.f32 %v709, 1.0
    %v715 = vadd.f32 %v711, 1.0
    %v716 = vadd.f32 %v713, 1.0
    %v717 = vrcp.pop %v714
    %v718 = vmul.f32 %v714, %v717
    %v719 = vsub.f32 1.0, %v718
    %v720 = vmul.f32 %v717, %v719
    %v721 = vadd.f32 %v717, %v720
    %vm722 = vweird.f32 %v714
    %vm723 = vweird.f32 %v717
    %vm724 = vmor %vm722, %vm723
    %v725 = vsel %vm724, %v717, %v721
    %v726 = vand.u32 2147483647, %v714
    %vm727 = vcmp.eq.f32.partialorder %v726, 8.507059e+37
    %v728 = vand.u32 %v714, 2147483648
    %v729 = vor.u32 1.1754944e-38, %v728
    %v730 = vsel %vm727, %v729, %v725
    %v731 = vmul.f32 1.0, %v730
    %v732 = vrcp.pop %v715
    %v733 = vmul.f32 %v715, %v732
    %v734 = vsub.f32 1.0, %v733
    %v735 = vmul.f32 %v732, %v734
    %v736 = vadd.f32 %v732, %v735
    %vm737 = vweird.f32 %v715
    %vm738 = vweird.f32 %v732
    %vm739 = vmor %vm737, %vm738
    %v740 = vsel %vm739, %v732, %v736
    %v741 = vand.u32 2147483647, %v715
    %vm742 = vcmp.eq.f32.partialorder %v741, 8.507059e+37
    %v743 = vand.u32 %v715, 2147483648
    %v744 = vor.u32 1.1754944e-38, %v743
    %v745 = vsel %vm742, %v744, %v740
    %v746 = vmul.f32 1.0, %v745
    %v747 = vrcp.pop %v716
    %v748 = vmul.f32 %v716, %v747
    %v749 = vsub.f32 1.0, %v748
    %v750 = vmul.f32 %v747, %v749
    %v751 = vadd.f32 %v747, %v750
    %vm752 = vweird.f32 %v716
    %vm753 = vweird.f32 %v747
    %vm754 = vmor %vm752, %vm753
    %v755 = vsel %vm754, %v747, %v751
    %v756 = vand.u32 2147483647, %v716
    %vm757 = vcmp.eq.f32.partialorder %v756, 8.507059e+37
    %v758 = vand.u32 %v716, 2147483648
    %v759 = vor.u32 1.1754944e-38, %v758
    %v760 = vsel %vm757, %v759, %v755
    %v761 = vmul.f32 1.0, %v760
    %v762 = vtanh.pop %v704
    %v764 = vrot.slane %v603, 6
    %v766 = vmul.f32 %v746, %v764
    %v767 = vmul.f32 %v731, %v762
    %v768 = vadd.f32 %v766, %v767
    %v769 = vtanh.pop %v768
    %v770 = vmul.f32 %v761, %v769
    %v772 = vrot.slane %v770, 4
    %774 = vmatpush.msra.mxu0 %v176
    %775 = vmatpush.msra.mxu0 %v172
    %776 = vmatpush.msra.mxu0 %v168
    %777 = vmatpush.msra.mxu0 %v164
    %778 = vmatpush.msra.mxu0 %v160
    %779 = vmatpush.msra.mxu0 %v156
    %780 = vmatpush.msra.mxu0 %v152
    %781 = vmatpush.msra.mxu0 %v148
    %782 = vmatpush.msra.mxu0 %v144
    %783 = vmatpush.msra.mxu0 %v140
    %784 = vmatpush.msra.mxu0 %v136
    %785 = vmatpush.msra.mxu0 %v132
    %786 = vmatpush.msra.mxu0 %v128
    %787 = vmatpush.msra.mxu0 %v124
    %788 = vmatpush.msra.mxu0 %v120
    %789 = vmatpush.msra.mxu0 %v116
    %790 = vmatmul.f32.gmra.mxu0 %v772
    %v791 = vpop.f32.mrf.mxu0
    %v792 = vadd.f32 0.0, %v791
    %793 = vdwg.mxu0
    %794 = vmatpush.msra.mxu0 %v177
    %795 = vmatpush.msra.mxu0 %v173
    %796 = vmatpush.msra.mxu0 %v169
    %797 = vmatpush.msra.mxu0 %v165
    %798 = vmatpush.msra.mxu0 %v161
    %799 = vmatpush.msra.mxu0 %v157
    %800 = vmatpush.msra.mxu0 %v153
    %801 = vmatpush.msra.mxu0 %v149
    %802 = vmatpush.msra.mxu0 %v145
    %803 = vmatpush.msra.mxu0 %v141
    %804 = vmatpush.msra.mxu0 %v137
    %805 = vmatpush.msra.mxu0 %v133
    %806 = vmatpush.msra.mxu0 %v129
    %807 = vmatpush.msra.mxu0 %v125
    %808 = vmatpush.msra.mxu0 %v121
    %809 = vmatpush.msra.mxu0 %v117
    %810 = vmatmul.f32.gmra.mxu0 %v772
    %v811 = vpop.f32.mrf.mxu0
    %v812 = vadd.f32 0.0, %v811
    %813 = vdwg.mxu0
    %814 = vmatpush.msra.mxu0 %v178
    %815 = vmatpush.msra.mxu0 %v174
    %816 = vmatpush.msra.mxu0 %v170
    %817 = vmatpush.msra.mxu0 %v166
    %818 = vmatpush.msra.mxu0 %v162
    %819 = vmatpush.msra.mxu0 %v158
    %820 = vmatpush.msra.mxu0 %v154
    %821 = vmatpush.msra.mxu0 %v150
    %822 = vmatpush.msra.mxu0 %v146
    %823 = vmatpush.msra.mxu0 %v142
    %824 = vmatpush.msra.mxu0 %v138
    %825 = vmatpush.msra.mxu0 %v134
    %826 = vmatpush.msra.mxu0 %v130
    %827 = vmatpush.msra.mxu0 %v126
    %828 = vmatpush.msra.mxu0 %v122
    %829 = vmatpush.msra.mxu0 %v118
    %830 = vmatmul.f32.gmra.mxu0 %v772
    %v831 = vpop.f32.mrf.mxu0
    %v832 = vadd.f32 0.0, %v831
    %833 = vdwg.mxu0
    %834 = vmatpush.msra.mxu0 %v179
    %835 = vmatpush.msra.mxu0 %v175
    %836 = vmatpush.msra.mxu0 %v171
    %837 = vmatpush.msra.mxu0 %v167
    %838 = vmatpush.msra.mxu0 %v163
    %839 = vmatpush.msra.mxu0 %v159
    %840 = vmatpush.msra.mxu0 %v155
    %841 = vmatpush.msra.mxu0 %v151
    %842 = vmatpush.msra.mxu0 %v147
    %843 = vmatpush.msra.mxu0 %v143
    %844 = vmatpush.msra.mxu0 %v139
    %845 = vmatpush.msra.mxu0 %v135
    %846 = vmatpush.msra.mxu0 %v131
    %847 = vmatpush.msra.mxu0 %v127
    %848 = vmatpush.msra.mxu0 %v123
    %849 = vmatpush.msra.mxu0 %v119
    %850 = vmatmul.f32.gmra.mxu0 %v772
    %v851 = vpop.f32.mrf.mxu0
    %v852 = vadd.f32 0.0, %v851
    %853 = vdwg.mxu0
    %v858 = vrot.slane %v792, 2
    %v859 = vrot.slane %v812, 2
    %v860 = vrot.slane %v832, 2
    %v861 = vrot.slane %v852, 2
    %v866 = vadd.f32 %v223, %v858
    %v867 = vadd.f32 %v246, %v859
    %v868 = vadd.f32 %v269, %v860
    %v869 = vadd.f32 %v292, %v861
    %v870 = vxor.u32 %v866, 2147483648
    %v871 = vxor.u32 %v867, 2147483648
    %v872 = vxor.u32 %v868, 2147483648
    %v873 = vmul.f32 %v870, 1.442695
    %v874 = vpow.pop %v873
    %v875 = vmul.f32 %v871, 1.442695
    %v876 = vpow.pop %v875
    %v877 = vmul.f32 %v872, 1.442695
    %v878 = vpow.pop %v877
    %v879 = vadd.f32 %v874, 1.0
    %v880 = vadd.f32 %v876, 1.0
    %v881 = vadd.f32 %v878, 1.0
    %v882 = vrcp.pop %v879
    %v883 = vmul.f32 %v879, %v882
    %v884 = vsub.f32 1.0, %v883
    %v885 = vmul.f32 %v882, %v884
    %v886 = vadd.f32 %v882, %v885
    %vm887 = vweird.f32 %v879
    %vm888 = vweird.f32 %v882
    %vm889 = vmor %vm887, %vm888
    %v890 = vsel %vm889, %v882, %v886
    %v891 = vand.u32 2147483647, %v879
    %vm892 = vcmp.eq.f32.partialorder %v891, 8.507059e+37
    %v893 = vand.u32 %v879, 2147483648
    %v894 = vor.u32 1.1754944e-38, %v893
    %v895 = vsel %vm892, %v894, %v890
    %v896 = vmul.f32 1.0, %v895
    %v897 = vrcp.pop %v880
    %v898 = vmul.f32 %v880, %v897
    %v899 = vsub.f32 1.0, %v898
    %v900 = vmul.f32 %v897, %v899
    %v901 = vadd.f32 %v897, %v900
    %vm902 = vweird.f32 %v880
    %vm903 = vweird.f32 %v897
    %vm904 = vmor %vm902, %vm903
    %v905 = vsel %vm904, %v897, %v901
    %v906 = vand.u32 2147483647, %v880
    %vm907 = vcmp.eq.f32.partialorder %v906, 8.507059e+37
    %v908 = vand.u32 %v880, 2147483648
    %v909 = vor.u32 1.1754944e-38, %v908
    %v910 = vsel %vm907, %v909, %v905
    %v911 = vmul.f32 1.0, %v910
    %v912 = vrcp.pop %v881
    %v913 = vmul.f32 %v881, %v912
    %v914 = vsub.f32 1.0, %v913
    %v915 = vmul.f32 %v912, %v914
    %v916 = vadd.f32 %v912, %v915
    %vm917 = vweird.f32 %v881
    %vm918 = vweird.f32 %v912
    %vm919 = vmor %vm917, %vm918
    %v920 = vsel %vm919, %v912, %v916
    %v921 = vand.u32 2147483647, %v881
    %vm922 = vcmp.eq.f32.partialorder %v921, 8.507059e+37
    %v923 = vand.u32 %v881, 2147483648
    %v924 = vor.u32 1.1754944e-38, %v923
    %v925 = vsel %vm922, %v924, %v920
    %v926 = vmul.f32 1.0, %v925
    %v927 = vtanh.pop %v869
    %v929 = vrot.slane %v768, 6
    %v931 = vmul.f32 %v911, %v929
    %v932 = vmul.f32 %v896, %v927
    %v933 = vadd.f32 %v931, %v932
    %v934 = vtanh.pop %v933
    %v935 = vmul.f32 %v926, %v934
    %v937 = vrot.slane %v935, 6
    %939 = vmatpush.msra.mxu0 %v176
    %940 = vmatpush.msra.mxu0 %v172
    %941 = vmatpush.msra.mxu0 %v168
    %942 = vmatpush.msra.mxu0 %v164
    %943 = vmatpush.msra.mxu0 %v160
    %944 = vmatpush.msra.mxu0 %v156
    %945 = vmatpush.msra.mxu0 %v152
    %946 = vmatpush.msra.mxu0 %v148
    %947 = vmatpush.msra.mxu0 %v144
    %948 = vmatpush.msra.mxu0 %v140
    %949 = vmatpush.msra.mxu0 %v136
    %950 = vmatpush.msra.mxu0 %v132
    %951 = vmatpush.msra.mxu0 %v128
    %952 = vmatpush.msra.mxu0 %v124
    %953 = vmatpush.msra.mxu0 %v120
    %954 = vmatpush.msra.mxu0 %v116
    %955 = vmatmul.f32.gmra.mxu0 %v937
    %v956 = vpop.f32.mrf.mxu0
    %v957 = vadd.f32 0.0, %v956
    %958 = vdwg.mxu0
    %959 = vmatpush.msra.mxu0 %v177
    %960 = vmatpush.msra.mxu0 %v173
    %961 = vmatpush.msra.mxu0 %v169
    %962 = vmatpush.msra.mxu0 %v165
    %963 = vmatpush.msra.mxu0 %v161
    %964 = vmatpush.msra.mxu0 %v157
    %965 = vmatpush.msra.mxu0 %v153
    %966 = vmatpush.msra.mxu0 %v149
    %967 = vmatpush.msra.mxu0 %v145
    %968 = vmatpush.msra.mxu0 %v141
    %969 = vmatpush.msra.mxu0 %v137
    %970 = vmatpush.msra.mxu0 %v133
    %971 = vmatpush.msra.mxu0 %v129
    %972 = vmatpush.msra.mxu0 %v125
    %973 = vmatpush.msra.mxu0 %v121
    %974 = vmatpush.msra.mxu0 %v117
    %975 = vmatmul.f32.gmra.mxu0 %v937
    %v976 = vpop.f32.mrf.mxu0
    %v977 = vadd.f32 0.0, %v976
    %978 = vdwg.mxu0
    %979 = vmatpush.msra.mxu0 %v178
    %980 = vmatpush.msra.mxu0 %v174
    %981 = vmatpush.msra.mxu0 %v170
    %982 = vmatpush.msra.mxu0 %v166
    %983 = vmatpush.msra.mxu0 %v162
    %984 = vmatpush.msra.mxu0 %v158
    %985 = vmatpush.msra.mxu0 %v154
    %986 = vmatpush.msra.mxu0 %v150
    %987 = vmatpush.msra.mxu0 %v146
    %988 = vmatpush.msra.mxu0 %v142
    %989 = vmatpush.msra.mxu0 %v138
    %990 = vmatpush.msra.mxu0 %v134
    %991 = vmatpush.msra.mxu0 %v130
    %992 = vmatpush.msra.mxu0 %v126
    %993 = vmatpush.msra.mxu0 %v122
    %994 = vmatpush.msra.mxu0 %v118
    %995 = vmatmul.f32.gmra.mxu0 %v937
    %v996 = vpop.f32.mrf.mxu0
    %v997 = vadd.f32 0.0, %v996
    %998 = vdwg.mxu0
    %999 = vmatpush.msra.mxu0 %v179
    %1000 = vmatpush.msra.mxu0 %v175
    %1001 = vmatpush.msra.mxu0 %v171
    %1002 = vmatpush.msra.mxu0 %v167
    %1003 = vmatpush.msra.mxu0 %v163
    %1004 = vmatpush.msra.mxu0 %v159
    %1005 = vmatpush.msra.mxu0 %v155
    %1006 = vmatpush.msra.mxu0 %v151
    %1007 = vmatpush.msra.mxu0 %v147
    %1008 = vmatpush.msra.mxu0 %v143
    %1009 = vmatpush.msra.mxu0 %v139
    %1010 = vmatpush.msra.mxu0 %v135
    %1011 = vmatpush.msra.mxu0 %v131
    %1012 = vmatpush.msra.mxu0 %v127
    %1013 = vmatpush.msra.mxu0 %v123
    %1014 = vmatpush.msra.mxu0 %v119
    %1015 = vmatmul.f32.gmra.mxu0 %v937
    %v1016 = vpop.f32.mrf.mxu0
    %v1017 = vadd.f32 0.0, %v1016
    %1018 = vdwg.mxu0
    %v1019 = vadd.f32 %v226, %v957
    %v1020 = vadd.f32 %v249, %v977
    %v1021 = vadd.f32 %v272, %v997
    %v1022 = vadd.f32 %v295, %v1017
    %v1023 = vxor.u32 %v1019, 2147483648
    %v1024 = vxor.u32 %v1020, 2147483648
    %v1025 = vxor.u32 %v1021, 2147483648
    %v1026 = vmul.f32 %v1023, 1.442695
    %v1027 = vpow.pop %v1026
    %v1028 = vmul.f32 %v1024, 1.442695
    %v1029 = vpow.pop %v1028
    %v1030 = vmul.f32 %v1025, 1.442695
    %v1031 = vpow.pop %v1030
    %v1032 = vadd.f32 %v1027, 1.0
    %v1033 = vadd.f32 %v1029, 1.0
    %v1034 = vadd.f32 %v1031, 1.0
    %v1035 = vrcp.pop %v1032
    %v1036 = vmul.f32 %v1032, %v1035
    %v1037 = vsub.f32 1.0, %v1036
    %v1038 = vmul.f32 %v1035, %v1037
    %v1039 = vadd.f32 %v1035, %v1038
    %vm1040 = vweird.f32 %v1032
    %vm1041 = vweird.f32 %v1035
    %vm1042 = vmor %vm1040, %vm1041
    %v1043 = vsel %vm1042, %v1035, %v1039
    %v1044 = vand.u32 2147483647, %v1032
    %vm1045 = vcmp.eq.f32.partialorder %v1044, 8.507059e+37
    %v1046 = vand.u32 %v1032, 2147483648
    %v1047 = vor.u32 1.1754944e-38, %v1046
    %v1048 = vsel %vm1045, %v1047, %v1043
    %v1049 = vmul.f32 1.0, %v1048
    %v1050 = vrcp.pop %v1033
    %v1051 = vmul.f32 %v1033, %v1050
    %v1052 = vsub.f32 1.0, %v1051
    %v1053 = vmul.f32 %v1050, %v1052
    %v1054 = vadd.f32 %v1050, %v1053
    %vm1055 = vweird.f32 %v1033
    %vm1056 = vweird.f32 %v1050
    %vm1057 = vmor %vm1055, %vm1056
    %v1058 = vsel %vm1057, %v1050, %v1054
    %v1059 = vand.u32 2147483647, %v1033
    %vm1060 = vcmp.eq.f32.partialorder %v1059, 8.507059e+37
    %v1061 = vand.u32 %v1033, 2147483648
    %v1062 = vor.u32 1.1754944e-38, %v1061
    %v1063 = vsel %vm1060, %v1062, %v1058
    %v1064 = vmul.f32 1.0, %v1063
    %v1065 = vrcp.pop %v1034
    %v1066 = vmul.f32 %v1034, %v1065
    %v1067 = vsub.f32 1.0, %v1066
    %v1068 = vmul.f32 %v1065, %v1067
    %v1069 = vadd.f32 %v1065, %v1068
    %vm1070 = vweird.f32 %v1034
    %vm1071 = vweird.f32 %v1065
    %vm1072 = vmor %vm1070, %vm1071
    %v1073 = vsel %vm1072, %v1065, %v1069
    %v1074 = vand.u32 2147483647, %v1034
    %vm1075 = vcmp.eq.f32.partialorder %v1074, 8.507059e+37
    %v1076 = vand.u32 %v1034, 2147483648
    %v1077 = vor.u32 1.1754944e-38, %v1076
    %v1078 = vsel %vm1075, %v1077, %v1073
    %v1079 = vmul.f32 1.0, %v1078
    %v1080 = vtanh.pop %v1022
    %v1082 = vrot.slane %v933, 6
    %v1084 = vmul.f32 %v1064, %v1082
    %v1085 = vmul.f32 %v1049, %v1080
    %v1086 = vadd.f32 %v1084, %v1085
    %v1087 = vtanh.pop %v1086
    %v1088 = vmul.f32 %v1079, %v1087
    %1089 = vmatpush.msra.mxu0 %v176
    %1090 = vmatpush.msra.mxu0 %v172
    %1091 = vmatpush.msra.mxu0 %v168
    %1092 = vmatpush.msra.mxu0 %v164
    %1093 = vmatpush.msra.mxu0 %v160
    %1094 = vmatpush.msra.mxu0 %v156
    %1095 = vmatpush.msra.mxu0 %v152
    %1096 = vmatpush.msra.mxu0 %v148
    %1097 = vmatpush.msra.mxu0 %v144
    %1098 = vmatpush.msra.mxu0 %v140
    %1099 = vmatpush.msra.mxu0 %v136
    %1100 = vmatpush.msra.mxu0 %v132
    %1101 = vmatpush.msra.mxu0 %v128
    %1102 = vmatpush.msra.mxu0 %v124
    %1103 = vmatpush.msra.mxu0 %v120
    %1104 = vmatpush.msra.mxu0 %v116
    %1105 = vmatmul.f32.gmra.mxu0 %v1088
    %v1106 = vpop.f32.mrf.mxu0
    %v1107 = vadd.f32 0.0, %v1106
    %1108 = vdwg.mxu0
    %1109 = vmatpush.msra.mxu0 %v177
    %1110 = vmatpush.msra.mxu0 %v173
    %1111 = vmatpush.msra.mxu0 %v169
    %1112 = vmatpush.msra.mxu0 %v165
    %1113 = vmatpush.msra.mxu0 %v161
    %1114 = vmatpush.msra.mxu0 %v157
    %1115 = vmatpush.msra.mxu0 %v153
    %1116 = vmatpush.msra.mxu0 %v149
    %1117 = vmatpush.msra.mxu0 %v145
    %1118 = vmatpush.msra.mxu0 %v141
    %1119 = vmatpush.msra.mxu0 %v137
    %1120 = vmatpush.msra.mxu0 %v133
    %1121 = vmatpush.msra.mxu0 %v129
    %1122 = vmatpush.msra.mxu0 %v125
    %1123 = vmatpush.msra.mxu0 %v121
    %1124 = vmatpush.msra.mxu0 %v117
    %1125 = vmatmul.f32.gmra.mxu0 %v1088
    %v1126 = vpop.f32.mrf.mxu0
    %v1127 = vadd.f32 0.0, %v1126
    %1128 = vdwg.mxu0
    %1129 = vmatpush.msra.mxu0 %v178
    %1130 = vmatpush.msra.mxu0 %v174
    %1131 = vmatpush.msra.mxu0 %v170
    %1132 = vmatpush.msra.mxu0 %v166
    %1133 = vmatpush.msra.mxu0 %v162
    %1134 = vmatpush.msra.mxu0 %v158
    %1135 = vmatpush.msra.mxu0 %v154
    %1136 = vmatpush.msra.mxu0 %v150
    %1137 = vmatpush.msra.mxu0 %v146
    %1138 = vmatpush.msra.mxu0 %v142
    %1139 = vmatpush.msra.mxu0 %v138
    %1140 = vmatpush.msra.mxu0 %v134
    %1141 = vmatpush.msra.mxu0 %v130
    %1142 = vmatpush.msra.mxu0 %v126
    %1143 = vmatpush.msra.mxu0 %v122
    %1144 = vmatpush.msra.mxu0 %v118
    %1145 = vmatmul.f32.gmra.mxu0 %v1088
    %v1146 = vpop.f32.mrf.mxu0
    %v1147 = vadd.f32 0.0, %v1146
    %1148 = vdwg.mxu0
    %1149 = vmatpush.msra.mxu0 %v179
    %1150 = vmatpush.msra.mxu0 %v175
    %1151 = vmatpush.msra.mxu0 %v171
    %1152 = vmatpush.msra.mxu0 %v167
    %1153 = vmatpush.msra.mxu0 %v163
    %1154 = vmatpush.msra.mxu0 %v159
    %1155 = vmatpush.msra.mxu0 %v155
    %1156 = vmatpush.msra.mxu0 %v151
    %1157 = vmatpush.msra.mxu0 %v147
    %1158 = vmatpush.msra.mxu0 %v143
    %1159 = vmatpush.msra.mxu0 %v139
    %1160 = vmatpush.msra.mxu0 %v135
    %1161 = vmatpush.msra.mxu0 %v131
    %1162 = vmatpush.msra.mxu0 %v127
    %1163 = vmatpush.msra.mxu0 %v123
    %1164 = vmatpush.msra.mxu0 %v119
    %1165 = vmatmul.f32.gmra.mxu0 %v1088
    %v1166 = vpop.f32.mrf.mxu0
    %v1167 = vadd.f32 0.0, %v1166
    %1168 = vdwg.mxu0
    %v1173 = vrot.slane %v1107, 6
    %v1174 = vrot.slane %v1127, 6
    %v1175 = vrot.slane %v1147, 6
    %v1176 = vrot.slane %v1167, 6
    %v1181 = vadd.f32 %v226, %v1173
    %v1182 = vadd.f32 %v249, %v1174
    %v1183 = vadd.f32 %v272, %v1175
    %v1184 = vadd.f32 %v295, %v1176
    %v1185 = vxor.u32 %v1181, 2147483648
    %v1186 = vxor.u32 %v1182, 2147483648
    %v1187 = vxor.u32 %v1183, 2147483648
    %v1188 = vmul.f32 %v1185, 1.442695
    %v1189 = vpow.pop %v1188
    %v1190 = vmul.f32 %v1186, 1.442695
    %v1191 = vpow.pop %v1190
    %v1192 = vmul.f32 %v1187, 1.442695
    %v1193 = vpow.pop %v1192
    %v1194 = vadd.f32 %v1189, 1.0
    %v1195 = vadd.f32 %v1191, 1.0
    %v1196 = vadd.f32 %v1193, 1.0
    %v1197 = vrcp.pop %v1194
    %v1198 = vmul.f32 %v1194, %v1197
    %v1199 = vsub.f32 1.0, %v1198
    %v1200 = vmul.f32 %v1197, %v1199
    %v1201 = vadd.f32 %v1197, %v1200
    %vm1202 = vweird.f32 %v1194
    %vm1203 = vweird.f32 %v1197
    %vm1204 = vmor %vm1202, %vm1203
    %v1205 = vsel %vm1204, %v1197, %v1201
    %v1206 = vand.u32 2147483647, %v1194
    %vm1207 = vcmp.eq.f32.partialorder %v1206, 8.507059e+37
    %v1208 = vand.u32 %v1194, 2147483648
    %v1209 = vor.u32 1.1754944e-38, %v1208
    %v1210 = vsel %vm1207, %v1209, %v1205
    %v1211 = vmul.f32 1.0, %v1210
    %v1212 = vrcp.pop %v1195
    %v1213 = vmul.f32 %v1195, %v1212
    %v1214 = vsub.f32 1.0, %v1213
    %v1215 = vmul.f32 %v1212, %v1214
    %v1216 = vadd.f32 %v1212, %v1215
    %vm1217 = vweird.f32 %v1195
    %vm1218 = vweird.f32 %v1212
    %vm1219 = vmor %vm1217, %vm1218
    %v1220 = vsel %vm1219, %v1212, %v1216
    %v1221 = vand.u32 2147483647, %v1195
    %vm1222 = vcmp.eq.f32.partialorder %v1221, 8.507059e+37
    %v1223 = vand.u32 %v1195, 2147483648
    %v1224 = vor.u32 1.1754944e-38, %v1223
    %v1225 = vsel %vm1222, %v1224, %v1220
    %v1226 = vmul.f32 1.0, %v1225
    %v1227 = vrcp.pop %v1196
    %v1228 = vmul.f32 %v1196, %v1227
    %v1229 = vsub.f32 1.0, %v1228
    %v1230 = vmul.f32 %v1227, %v1229
    %v1231 = vadd.f32 %v1227, %v1230
    %vm1232 = vweird.f32 %v1196
    %vm1233 = vweird.f32 %v1227
    %vm1234 = vmor %vm1232, %vm1233
    %v1235 = vsel %vm1234, %v1227, %v1231
    %v1236 = vand.u32 2147483647, %v1196
    %vm1237 = vcmp.eq.f32.partialorder %v1236, 8.507059e+37
    %v1238 = vand.u32 %v1196, 2147483648
    %v1239 = vor.u32 1.1754944e-38, %v1238
    %v1240 = vsel %vm1237, %v1239, %v1235
    %v1241 = vmul.f32 1.0, %v1240
    %v1242 = vtanh.pop %v1184
    %v1244 = vrot.slane %v1086, 6
    %v1246 = vmul.f32 %v1226, %v1244
    %v1247 = vmul.f32 %v1211, %v1242
    %v1248 = vadd.f32 %v1246, %v1247
    %v1249 = vtanh.pop %v1248
    %v1250 = vmul.f32 %v1241, %v1249
    %v1252 = vrot.slane %v1250, 2
    %1254 = vmatpush.msra.mxu0 %v176
    %1255 = vmatpush.msra.mxu0 %v172
    %1256 = vmatpush.msra.mxu0 %v168
    %1257 = vmatpush.msra.mxu0 %v164
    %1258 = vmatpush.msra.mxu0 %v160
    %1259 = vmatpush.msra.mxu0 %v156
    %1260 = vmatpush.msra.mxu0 %v152
    %1261 = vmatpush.msra.mxu0 %v148
    %1262 = vmatpush.msra.mxu0 %v144
    %1263 = vmatpush.msra.mxu0 %v140
    %1264 = vmatpush.msra.mxu0 %v136
    %1265 = vmatpush.msra.mxu0 %v132
    %1266 = vmatpush.msra.mxu0 %v128
    %1267 = vmatpush.msra.mxu0 %v124
    %1268 = vmatpush.msra.mxu0 %v120
    %1269 = vmatpush.msra.mxu0 %v116
    %1270 = vmatmul.f32.gmra.mxu0 %v1252
    %v1271 = vpop.f32.mrf.mxu0
    %v1272 = vadd.f32 0.0, %v1271
    %1273 = vdwg.mxu0
    %1274 = vmatpush.msra.mxu0 %v177
    %1275 = vmatpush.msra.mxu0 %v173
    %1276 = vmatpush.msra.mxu0 %v169
    %1277 = vmatpush.msra.mxu0 %v165
    %1278 = vmatpush.msra.mxu0 %v161
    %1279 = vmatpush.msra.mxu0 %v157
    %1280 = vmatpush.msra.mxu0 %v153
    %1281 = vmatpush.msra.mxu0 %v149
    %1282 = vmatpush.msra.mxu0 %v145
    %1283 = vmatpush.msra.mxu0 %v141
    %1284 = vmatpush.msra.mxu0 %v137
    %1285 = vmatpush.msra.mxu0 %v133
    %1286 = vmatpush.msra.mxu0 %v129
    %1287 = vmatpush.msra.mxu0 %v125
    %1288 = vmatpush.msra.mxu0 %v121
    %1289 = vmatpush.msra.mxu0 %v117
    %1290 = vmatmul.f32.gmra.mxu0 %v1252
    %v1291 = vpop.f32.mrf.mxu0
    %v1292 = vadd.f32 0.0, %v1291
    %1293 = vdwg.mxu0
    %1294 = vmatpush.msra.mxu0 %v178
    %1295 = vmatpush.msra.mxu0 %v174
    %1296 = vmatpush.msra.mxu0 %v170
    %1297 = vmatpush.msra.mxu0 %v166
    %1298 = vmatpush.msra.mxu0 %v162
    %1299 = vmatpush.msra.mxu0 %v158
    %1300 = vmatpush.msra.mxu0 %v154
    %1301 = vmatpush.msra.mxu0 %v150
    %1302 = vmatpush.msra.mxu0 %v146
    %1303 = vmatpush.msra.mxu0 %v142
    %1304 = vmatpush.msra.mxu0 %v138
    %1305 = vmatpush.msra.mxu0 %v134
    %1306 = vmatpush.msra.mxu0 %v130
    %1307 = vmatpush.msra.mxu0 %v126
    %1308 = vmatpush.msra.mxu0 %v122
    %1309 = vmatpush.msra.mxu0 %v118
    %1310 = vmatmul.f32.gmra.mxu0 %v1252
    %v1311 = vpop.f32.mrf.mxu0
    %v1312 = vadd.f32 0.0, %v1311
    %1313 = vdwg.mxu0
    %1314 = vmatpush.msra.mxu0 %v179
    %1315 = vmatpush.msra.mxu0 %v175
    %1316 = vmatpush.msra.mxu0 %v171
    %1317 = vmatpush.msra.mxu0 %v167
    %1318 = vmatpush.msra.mxu0 %v163
    %1319 = vmatpush.msra.mxu0 %v159
    %1320 = vmatpush.msra.mxu0 %v155
    %1321 = vmatpush.msra.mxu0 %v151
    %1322 = vmatpush.msra.mxu0 %v147
    %1323 = vmatpush.msra.mxu0 %v143
    %1324 = vmatpush.msra.mxu0 %v139
    %1325 = vmatpush.msra.mxu0 %v135
    %1326 = vmatpush.msra.mxu0 %v131
    %1327 = vmatpush.msra.mxu0 %v127
    %1328 = vmatpush.msra.mxu0 %v123
    %1329 = vmatpush.msra.mxu0 %v119
    %1330 = vmatmul.f32.gmra.mxu0 %v1252
    %v1331 = vpop.f32.mrf.mxu0
    %v1332 = vadd.f32 0.0, %v1331
    %1333 = vdwg.mxu0
    %v1338 = vrot.slane %v1272, 4
    %v1339 = vrot.slane %v1292, 4
    %v1340 = vrot.slane %v1312, 4
    %v1341 = vrot.slane %v1332, 4
    %v1346 = vadd.f32 %v226, %v1338
    %v1347 = vadd.f32 %v249, %v1339
    %v1348 = vadd.f32 %v272, %v1340
    %v1349 = vadd.f32 %v295, %v1341
    %v1350 = vxor.u32 %v1346, 2147483648
    %v1351 = vxor.u32 %v1347, 2147483648
    %v1352 = vxor.u32 %v1348, 2147483648
    %v1353 = vmul.f32 %v1350, 1.442695
    %v1354 = vpow.pop %v1353
    %v1355 = vmul.f32 %v1351, 1.442695
    %v1356 = vpow.pop %v1355
    %v1357 = vmul.f32 %v1352, 1.442695
    %v1358 = vpow.pop %v1357
    %v1359 = vadd.f32 %v1354, 1.0
    %v1360 = vadd.f32 %v1356, 1.0
    %v1361 = vadd.f32 %v1358, 1.0
    %v1362 = vrcp.pop %v1359
    %v1363 = vmul.f32 %v1359, %v1362
    %v1364 = vsub.f32 1.0, %v1363
    %v1365 = vmul.f32 %v1362, %v1364
    %v1366 = vadd.f32 %v1362, %v1365
    %vm1367 = vweird.f32 %v1359
    %vm1368 = vweird.f32 %v1362
    %vm1369 = vmor %vm1367, %vm1368
    %v1370 = vsel %vm1369, %v1362, %v1366
    %v1371 = vand.u32 2147483647, %v1359
    %vm1372 = vcmp.eq.f32.partialorder %v1371, 8.507059e+37
    %v1373 = vand.u32 %v1359, 2147483648
    %v1374 = vor.u32 1.1754944e-38, %v1373
    %v1375 = vsel %vm1372, %v1374, %v1370
    %v1376 = vmul.f32 1.0, %v1375
    %v1377 = vrcp.pop %v1360
    %v1378 = vmul.f32 %v1360, %v1377
    %v1379 = vsub.f32 1.0, %v1378
    %v1380 = vmul.f32 %v1377, %v1379
    %v1381 = vadd.f32 %v1377, %v1380
    %vm1382 = vweird.f32 %v1360
    %vm1383 = vweird.f32 %v1377
    %vm1384 = vmor %vm1382, %vm1383
    %v1385 = vsel %vm1384, %v1377, %v1381
    %v1386 = vand.u32 2147483647, %v1360
    %vm1387 = vcmp.eq.f32.partialorder %v1386, 8.507059e+37
    %v1388 = vand.u32 %v1360, 2147483648
    %v1389 = vor.u32 1.1754944e-38, %v1388
    %v1390 = vsel %vm1387, %v1389, %v1385
    %v1391 = vmul.f32 1.0, %v1390
    %v1392 = vrcp.pop %v1361
    %v1393 = vmul.f32 %v1361, %v1392
    %v1394 = vsub.f32 1.0, %v1393
    %v1395 = vmul.f32 %v1392, %v1394
    %v1396 = vadd.f32 %v1392, %v1395
    %vm1397 = vweird.f32 %v1361
    %vm1398 = vweird.f32 %v1392
    %vm1399 = vmor %vm1397, %vm1398
    %v1400 = vsel %vm1399, %v1392, %v1396
    %v1401 = vand.u32 2147483647, %v1361
    %vm1402 = vcmp.eq.f32.partialorder %v1401, 8.507059e+37
    %v1403 = vand.u32 %v1361, 2147483648
    %v1404 = vor.u32 1.1754944e-38, %v1403
    %v1405 = vsel %vm1402, %v1404, %v1400
    %v1406 = vmul.f32 1.0, %v1405
    %v1407 = vtanh.pop %v1349
    %v1409 = vrot.slane %v1248, 6
    %v1411 = vmul.f32 %v1391, %v1409
    %v1412 = vmul.f32 %v1376, %v1407
    %v1413 = vadd.f32 %v1411, %v1412
    %v1414 = vtanh.pop %v1413
    %v1415 = vmul.f32 %v1406, %v1414
    %v1417 = vrot.slane %v1415, 4
    %1419 = vmatpush.msra.mxu0 %v176
    %1420 = vmatpush.msra.mxu0 %v172
    %1421 = vmatpush.msra.mxu0 %v168
    %1422 = vmatpush.msra.mxu0 %v164
    %1423 = vmatpush.msra.mxu0 %v160
    %1424 = vmatpush.msra.mxu0 %v156
    %1425 = vmatpush.msra.mxu0 %v152
    %1426 = vmatpush.msra.mxu0 %v148
    %1427 = vmatpush.msra.mxu0 %v144
    %1428 = vmatpush.msra.mxu0 %v140
    %1429 = vmatpush.msra.mxu0 %v136
    %1430 = vmatpush.msra.mxu0 %v132
    %1431 = vmatpush.msra.mxu0 %v128
    %1432 = vmatpush.msra.mxu0 %v124
    %1433 = vmatpush.msra.mxu0 %v120
    %1434 = vmatpush.msra.mxu0 %v116
    %1435 = vmatmul.f32.gmra.mxu0 %v1417
    %v1436 = vpop.f32.mrf.mxu0
    %v1437 = vadd.f32 0.0, %v1436
    %1438 = vdwg.mxu0
    %1439 = vmatpush.msra.mxu0 %v177
    %1440 = vmatpush.msra.mxu0 %v173
    %1441 = vmatpush.msra.mxu0 %v169
    %1442 = vmatpush.msra.mxu0 %v165
    %1443 = vmatpush.msra.mxu0 %v161
    %1444 = vmatpush.msra.mxu0 %v157
    %1445 = vmatpush.msra.mxu0 %v153
    %1446 = vmatpush.msra.mxu0 %v149
    %1447 = vmatpush.msra.mxu0 %v145
    %1448 = vmatpush.msra.mxu0 %v141
    %1449 = vmatpush.msra.mxu0 %v137
    %1450 = vmatpush.msra.mxu0 %v133
    %1451 = vmatpush.msra.mxu0 %v129
    %1452 = vmatpush.msra.mxu0 %v125
    %1453 = vmatpush.msra.mxu0 %v121
    %1454 = vmatpush.msra.mxu0 %v117
    %1455 = vmatmul.f32.gmra.mxu0 %v1417
    %v1456 = vpop.f32.mrf.mxu0
    %v1457 = vadd.f32 0.0, %v1456
    %1458 = vdwg.mxu0
    %1459 = vmatpush.msra.mxu0 %v178
    %1460 = vmatpush.msra.mxu0 %v174
    %1461 = vmatpush.msra.mxu0 %v170
    %1462 = vmatpush.msra.mxu0 %v166
    %1463 = vmatpush.msra.mxu0 %v162
    %1464 = vmatpush.msra.mxu0 %v158
    %1465 = vmatpush.msra.mxu0 %v154
    %1466 = vmatpush.msra.mxu0 %v150
    %1467 = vmatpush.msra.mxu0 %v146
    %1468 = vmatpush.msra.mxu0 %v142
    %1469 = vmatpush.msra.mxu0 %v138
    %1470 = vmatpush.msra.mxu0 %v134
    %1471 = vmatpush.msra.mxu0 %v130
    %1472 = vmatpush.msra.mxu0 %v126
    %1473 = vmatpush.msra.mxu0 %v122
    %1474 = vmatpush.msra.mxu0 %v118
    %1475 = vmatmul.f32.gmra.mxu0 %v1417
    %v1476 = vpop.f32.mrf.mxu0
    %v1477 = vadd.f32 0.0, %v1476
    %1478 = vdwg.mxu0
    %1479 = vmatpush.msra.mxu0 %v179
    %1480 = vmatpush.msra.mxu0 %v175
    %1481 = vmatpush.msra.mxu0 %v171
    %1482 = vmatpush.msra.mxu0 %v167
    %1483 = vmatpush.msra.mxu0 %v163
    %1484 = vmatpush.msra.mxu0 %v159
    %1485 = vmatpush.msra.mxu0 %v155
    %1486 = vmatpush.msra.mxu0 %v151
    %1487 = vmatpush.msra.mxu0 %v147
    %1488 = vmatpush.msra.mxu0 %v143
    %1489 = vmatpush.msra.mxu0 %v139
    %1490 = vmatpush.msra.mxu0 %v135
    %1491 = vmatpush.msra.mxu0 %v131
    %1492 = vmatpush.msra.mxu0 %v127
    %1493 = vmatpush.msra.mxu0 %v123
    %1494 = vmatpush.msra.mxu0 %v119
    %1495 = vmatmul.f32.gmra.mxu0 %v1417
    %v1496 = vpop.f32.mrf.mxu0
    %v1497 = vadd.f32 0.0, %v1496
    %1498 = vdwg.mxu0
    %v1503 = vrot.slane %v1437, 2
    %v1504 = vrot.slane %v1457, 2
    %v1505 = vrot.slane %v1477, 2
    %v1506 = vrot.slane %v1497, 2
    %v1511 = vadd.f32 %v226, %v1503
    %v1512 = vadd.f32 %v249, %v1504
    %v1513 = vadd.f32 %v272, %v1505
    %v1514 = vadd.f32 %v295, %v1506
    %v1515 = vxor.u32 %v1511, 2147483648
    %v1516 = vxor.u32 %v1512, 2147483648
    %v1517 = vxor.u32 %v1513, 2147483648
    %v1518 = vmul.f32 %v1515, 1.442695
    %v1519 = vpow.pop %v1518
    %v1520 = vmul.f32 %v1516, 1.442695
    %v1521 = vpow.pop %v1520
    %v1522 = vmul.f32 %v1517, 1.442695
    %v1523 = vpow.pop %v1522
    %v1524 = vadd.f32 %v1519, 1.0
    %v1525 = vadd.f32 %v1521, 1.0
    %v1526 = vadd.f32 %v1523, 1.0
    %v1527 = vrcp.pop %v1524
    %v1528 = vmul.f32 %v1524, %v1527
    %v1529 = vsub.f32 1.0, %v1528
    %v1530 = vmul.f32 %v1527, %v1529
    %v1531 = vadd.f32 %v1527, %v1530
    %vm1532 = vweird.f32 %v1524
    %vm1533 = vweird.f32 %v1527
    %vm1534 = vmor %vm1532, %vm1533
    %v1535 = vsel %vm1534, %v1527, %v1531
    %v1536 = vand.u32 2147483647, %v1524
    %vm1537 = vcmp.eq.f32.partialorder %v1536, 8.507059e+37
    %v1538 = vand.u32 %v1524, 2147483648
    %v1539 = vor.u32 1.1754944e-38, %v1538
    %v1540 = vsel %vm1537, %v1539, %v1535
    %v1541 = vmul.f32 1.0, %v1540
    %v1542 = vrcp.pop %v1525
    %v1543 = vmul.f32 %v1525, %v1542
    %v1544 = vsub.f32 1.0, %v1543
    %v1545 = vmul.f32 %v1542, %v1544
    %v1546 = vadd.f32 %v1542, %v1545
    %vm1547 = vweird.f32 %v1525
    %vm1548 = vweird.f32 %v1542
    %vm1549 = vmor %vm1547, %vm1548
    %v1550 = vsel %vm1549, %v1542, %v1546
    %v1551 = vand.u32 2147483647, %v1525
    %vm1552 = vcmp.eq.f32.partialorder %v1551, 8.507059e+37
    %v1553 = vand.u32 %v1525, 2147483648
    %v1554 = vor.u32 1.1754944e-38, %v1553
    %v1555 = vsel %vm1552, %v1554, %v1550
    %v1556 = vmul.f32 1.0, %v1555
    %v1557 = vrcp.pop %v1526
    %v1558 = vmul.f32 %v1526, %v1557
    %v1559 = vsub.f32 1.0, %v1558
    %v1560 = vmul.f32 %v1557, %v1559
    %v1561 = vadd.f32 %v1557, %v1560
    %vm1562 = vweird.f32 %v1526
    %vm1563 = vweird.f32 %v1557
    %vm1564 = vmor %vm1562, %vm1563
    %v1565 = vsel %vm1564, %v1557, %v1561
    %v1566 = vand.u32 2147483647, %v1526
    %vm1567 = vcmp.eq.f32.partialorder %v1566, 8.507059e+37
    %v1568 = vand.u32 %v1526, 2147483648
    %v1569 = vor.u32 1.1754944e-38, %v1568
    %v1570 = vsel %vm1567, %v1569, %v1565
    %v1571 = vmul.f32 1.0, %v1570
    %v1572 = vtanh.pop %v1514
    %v1574 = vrot.slane %v1413, 6
    %v1576 = vmul.f32 %v1556, %v1574
    %v1577 = vmul.f32 %v1541, %v1572
    %v1578 = vadd.f32 %v1576, %v1577
    %v1579 = vtanh.pop %v1578
    %v1580 = vmul.f32 %v1571, %v1579
    %v1581 = vld [vmem:[#allocation7] sm:$0xff]
    %v1582 = vld [vmem:[#allocation7 + $0x8] sm:$0xff]
    %v1583 = vld [vmem:[#allocation7 + $0x10] sm:$0xff]
    %v1584 = vld [vmem:[#allocation7 + $0x18] sm:$0xff]
    %v1585 = vld [vmem:[#allocation7 + $0x20] sm:$0xff]
    %v1586 = vld [vmem:[#allocation7 + $0x28] sm:$0xff]
    %v1587 = vld [vmem:[#allocation7 + $0x30] sm:$0xff]
    %v1588 = vld [vmem:[#allocation7 + $0x38] sm:$0xff]
    %v1589 = vld [vmem:[#allocation7 + $0x40] sm:$0xff]
    %v1590 = vld [vmem:[#allocation7 + $0x48] sm:$0xff]
    %v1591 = vld [vmem:[#allocation7 + $0x50] sm:$0xff]
    %v1592 = vld [vmem:[#allocation7 + $0x58] sm:$0xff]
    %v1593 = vld [vmem:[#allocation7 + $0x60] sm:$0xff]
    %v1594 = vld [vmem:[#allocation7 + $0x68] sm:$0xff]
    %v1595 = vld [vmem:[#allocation7 + $0x70] sm:$0xff]
    %v1596 = vld [vmem:[#allocation7 + $0x78] sm:$0xff]
    %v1597 = vld [vmem:[#allocation7 + $0x80] sm:$0xff]
    %v1598 = vld [vmem:[#allocation7 + $0x88] sm:$0xff]
    %v1599 = vld [vmem:[#allocation7 + $0x90] sm:$0xff]
    %v1600 = vld [vmem:[#allocation7 + $0x98] sm:$0xff]
    %v1601 = vld [vmem:[#allocation7 + $0xa0] sm:$0xff]
    %v1602 = vld [vmem:[#allocation7 + $0xa8] sm:$0xff]
    %v1603 = vld [vmem:[#allocation7 + $0xb0] sm:$0xff]
    %v1604 = vld [vmem:[#allocation7 + $0xb8] sm:$0xff]
    %v1605 = vld [vmem:[#allocation7 + $0xc0] sm:$0xff]
    %v1606 = vld [vmem:[#allocation7 + $0xc8] sm:$0xff]
    %v1607 = vld [vmem:[#allocation7 + $0xd0] sm:$0xff]
    %v1608 = vld [vmem:[#allocation7 + $0xd8] sm:$0xff]
    %v1609 = vld [vmem:[#allocation7 + $0xe0] sm:$0xff]
    %v1610 = vld [vmem:[#allocation7 + $0xe8] sm:$0xff]
    %v1611 = vld [vmem:[#allocation7 + $0xf0] sm:$0xff]
    %v1612 = vld [vmem:[#allocation7 + $0xf8] sm:$0xff]
    %v1613 = vld [vmem:[%s5] sm:$0x3]
    %v1615 = vperm.slane %v1613, 0
    %v1616 = vperm.slane %v1613, 1
    %v1620 = vrot.slane %v1580, 6
    %1622 = vmatpush.msra.mxu0 %v1611
    %1623 = vmatpush.msra.mxu0 %v1609
    %1624 = vmatpush.msra.mxu0 %v1607
    %1625 = vmatpush.msra.mxu0 %v1605
    %1626 = vmatpush.msra.mxu0 %v1603
    %1627 = vmatpush.msra.mxu0 %v1601
    %1628 = vmatpush.msra.mxu0 %v1599
    %1629 = vmatpush.msra.mxu0 %v1597
    %1630 = vmatpush.msra.mxu0 %v1595
    %1631 = vmatpush.msra.mxu0 %v1593
    %1632 = vmatpush.msra.mxu0 %v1591
    %1633 = vmatpush.msra.mxu0 %v1589
    %1634 = vmatpush.msra.mxu0 %v1587
    %1635 = vmatpush.msra.mxu0 %v1585
    %1636 = vmatpush.msra.mxu0 %v1583
    %1637 = vmatpush.msra.mxu0 %v1581
    %1638 = vmatmul.f32.gmra.mxu0 %v1620
    %v1639 = vpop.f32.mrf.mxu0
    %v1640 = vadd.f32 %v1615, %v1639
    %1641 = vdwg.mxu0
    %1642 = vmatpush.msra.mxu0 %v1612
    %1643 = vmatpush.msra.mxu0 %v1610
    %1644 = vmatpush.msra.mxu0 %v1608
    %1645 = vmatpush.msra.mxu0 %v1606
    %1646 = vmatpush.msra.mxu0 %v1604
    %1647 = vmatpush.msra.mxu0 %v1602
    %1648 = vmatpush.msra.mxu0 %v1600
    %1649 = vmatpush.msra.mxu0 %v1598
    %1650 = vmatpush.msra.mxu0 %v1596
    %1651 = vmatpush.msra.mxu0 %v1594
    %1652 = vmatpush.msra.mxu0 %v1592
    %1653 = vmatpush.msra.mxu0 %v1590
    %1654 = vmatpush.msra.mxu0 %v1588
    %1655 = vmatpush.msra.mxu0 %v1586
    %1656 = vmatpush.msra.mxu0 %v1584
    %1657 = vmatpush.msra.mxu0 %v1582
    %1658 = vmatmul.f32.gmra.mxu0 %v1620
    %v1659 = vpop.f32.mrf.mxu0
    %v1660 = vadd.f32 %v1616, %v1659
    %1661 = vdwg.mxu0
    %v1662 = vmax.f32 %v1640, 0.0
    %v1663 = vmax.f32 %v1660, 0.0
    %v1664 = vld [vmem:[#allocation8] sm:$0xff]
    %v1665 = vld [vmem:[#allocation8 + $0x8] sm:$0xff]
    %v1666 = vld [vmem:[#allocation8 + $0x10] sm:$0xff]
    %v1667 = vld [vmem:[#allocation8 + $0x18] sm:$0xff]
    %v1668 = vld [vmem:[#allocation8 + $0x20] sm:$0xff]
    %v1669 = vld [vmem:[#allocation8 + $0x28] sm:$0xff]
    %v1670 = vld [vmem:[#allocation8 + $0x30] sm:$0xff]
    %v1671 = vld [vmem:[#allocation8 + $0x38] sm:$0xff]
    %v1672 = vld [vmem:[#allocation8 + $0x40] sm:$0xff]
    %v1673 = vld [vmem:[#allocation8 + $0x48] sm:$0xff]
    %v1674 = vld [vmem:[#allocation8 + $0x50] sm:$0xff]
    %v1675 = vld [vmem:[#allocation8 + $0x58] sm:$0xff]
    %v1676 = vld [vmem:[#allocation8 + $0x60] sm:$0xff]
    %v1677 = vld [vmem:[#allocation8 + $0x68] sm:$0xff]
    %v1678 = vld [vmem:[#allocation8 + $0x70] sm:$0xff]
    %v1679 = vld [vmem:[#allocation8 + $0x78] sm:$0xff]
    %v1680 = vld [vmem:[#allocation8 + $0x80] sm:$0xff]
    %v1681 = vld [vmem:[#allocation8 + $0x88] sm:$0xff]
    %v1682 = vld [vmem:[#allocation8 + $0x90] sm:$0xff]
    %v1683 = vld [vmem:[#allocation8 + $0x98] sm:$0xff]
    %v1684 = vld [vmem:[#allocation8 + $0xa0] sm:$0xff]
    %v1685 = vld [vmem:[#allocation8 + $0xa8] sm:$0xff]
    %v1686 = vld [vmem:[#allocation8 + $0xb0] sm:$0xff]
    %v1687 = vld [vmem:[#allocation8 + $0xb8] sm:$0xff]
    %v1688 = vld [vmem:[#allocation8 + $0xc0] sm:$0xff]
    %v1689 = vld [vmem:[#allocation8 + $0xc8] sm:$0xff]
    %v1690 = vld [vmem:[#allocation8 + $0xd0] sm:$0xff]
    %v1691 = vld [vmem:[#allocation8 + $0xd8] sm:$0xff]
    %v1692 = vld [vmem:[#allocation8 + $0xe0] sm:$0xff]
    %v1693 = vld [vmem:[#allocation8 + $0xe8] sm:$0xff]
    %v1694 = vld [vmem:[#allocation8 + $0xf0] sm:$0xff]
    %v1695 = vld [vmem:[#allocation8 + $0xf8] sm:$0xff]
    %v1696 = vld [vmem:[#allocation8 + $0x100] sm:$0xff]
    %v1697 = vld [vmem:[#allocation8 + $0x108] sm:$0xff]
    %v1698 = vld [vmem:[#allocation8 + $0x110] sm:$0xff]
    %v1699 = vld [vmem:[#allocation8 + $0x118] sm:$0xff]
    %v1700 = vld [vmem:[#allocation8 + $0x120] sm:$0xff]
    %v1701 = vld [vmem:[#allocation8 + $0x128] sm:$0xff]
    %v1702 = vld [vmem:[#allocation8 + $0x130] sm:$0xff]
    %v1703 = vld [vmem:[#allocation8 + $0x138] sm:$0xff]
    %v1704 = vld [vmem:[#allocation8 + $0x140] sm:$0xff]
    %v1705 = vld [vmem:[#allocation8 + $0x148] sm:$0xff]
    %v1706 = vld [vmem:[#allocation8 + $0x150] sm:$0xff]
    %v1707 = vld [vmem:[#allocation8 + $0x158] sm:$0xff]
    %v1708 = vld [vmem:[#allocation8 + $0x160] sm:$0xff]
    %v1709 = vld [vmem:[#allocation8 + $0x168] sm:$0xff]
    %v1710 = vld [vmem:[#allocation8 + $0x170] sm:$0xff]
    %v1711 = vld [vmem:[#allocation8 + $0x178] sm:$0xff]
    %v1712 = vld [vmem:[#allocation8 + $0x180] sm:$0xff]
    %v1713 = vld [vmem:[#allocation8 + $0x188] sm:$0xff]
    %v1714 = vld [vmem:[#allocation8 + $0x190] sm:$0xff]
    %v1715 = vld [vmem:[#allocation8 + $0x198] sm:$0xff]
    %v1716 = vld [vmem:[#allocation8 + $0x1a0] sm:$0xff]
    %v1717 = vld [vmem:[#allocation8 + $0x1a8] sm:$0xff]
    %v1718 = vld [vmem:[#allocation8 + $0x1b0] sm:$0xff]
    %v1719 = vld [vmem:[#allocation8 + $0x1b8] sm:$0xff]
    %v1720 = vld [vmem:[#allocation8 + $0x1c0] sm:$0xff]
    %v1721 = vld [vmem:[#allocation8 + $0x1c8] sm:$0xff]
    %v1722 = vld [vmem:[#allocation8 + $0x1d0] sm:$0xff]
    %v1723 = vld [vmem:[#allocation8 + $0x1d8] sm:$0xff]
    %v1724 = vld [vmem:[#allocation8 + $0x1e0] sm:$0xff]
    %v1725 = vld [vmem:[#allocation8 + $0x1e8] sm:$0xff]
    %v1726 = vld [vmem:[#allocation8 + $0x1f0] sm:$0xff]
    %v1727 = vld [vmem:[#allocation8 + $0x1f8] sm:$0xff]
    %v1728 = vld [vmem:[%s7] sm:$0x3]
    %v1730 = vperm.slane %v1728, 0
    %v1731 = vperm.slane %v1728, 1
    %1734 = vmatpush.msra.mxu0 %v1694
    %1735 = vmatpush.msra.mxu0 %v1692
    %1736 = vmatpush.msra.mxu0 %v1690
    %1737 = vmatpush.msra.mxu0 %v1688
    %1738 = vmatpush.msra.mxu0 %v1686
    %1739 = vmatpush.msra.mxu0 %v1684
    %1740 = vmatpush.msra.mxu0 %v1682
    %1741 = vmatpush.msra.mxu0 %v1680
    %1742 = vmatpush.msra.mxu0 %v1678
    %1743 = vmatpush.msra.mxu0 %v1676
    %1744 = vmatpush.msra.mxu0 %v1674
    %1745 = vmatpush.msra.mxu0 %v1672
    %1746 = vmatpush.msra.mxu0 %v1670
    %1747 = vmatpush.msra.mxu0 %v1668
    %1748 = vmatpush.msra.mxu0 %v1666
    %1749 = vmatpush.msra.mxu0 %v1664
    %1750 = vmatmul.f32.gmra.mxu0 %v1662
    %v1751 = vpop.f32.mrf.mxu0
    %v1752 = vadd.f32 %v1730, %v1751
    %1753 = vdwg.mxu0
    %1754 = vmatpush.msra.mxu0 %v1726
    %1755 = vmatpush.msra.mxu0 %v1724
    %1756 = vmatpush.msra.mxu0 %v1722
    %1757 = vmatpush.msra.mxu0 %v1720
    %1758 = vmatpush.msra.mxu0 %v1718
    %1759 = vmatpush.msra.mxu0 %v1716
    %1760 = vmatpush.msra.mxu0 %v1714
    %1761 = vmatpush.msra.mxu0 %v1712
    %1762 = vmatpush.msra.mxu0 %v1710
    %1763 = vmatpush.msra.mxu0 %v1708
    %1764 = vmatpush.msra.mxu0 %v1706
    %1765 = vmatpush.msra.mxu0 %v1704
    %1766 = vmatpush.msra.mxu0 %v1702
    %1767 = vmatpush.msra.mxu0 %v1700
    %1768 = vmatpush.msra.mxu0 %v1698
    %1769 = vmatpush.msra.mxu0 %v1696
    %1770 = vmatmul.f32.gmra.mxu0 %v1663
    %v1771 = vpop.f32.mrf.mxu0
    %v1772 = vadd.f32 %v1752, %v1771
    %1773 = vdwg.mxu0
    %1774 = vmatpush.msra.mxu0 %v1695
    %1775 = vmatpush.msra.mxu0 %v1693
    %1776 = vmatpush.msra.mxu0 %v1691
    %1777 = vmatpush.msra.mxu0 %v1689
    %1778 = vmatpush.msra.mxu0 %v1687
    %1779 = vmatpush.msra.mxu0 %v1685
    %1780 = vmatpush.msra.mxu0 %v1683
    %1781 = vmatpush.msra.mxu0 %v1681
    %1782 = vmatpush.msra.mxu0 %v1679
    %1783 = vmatpush.msra.mxu0 %v1677
    %1784 = vmatpush.msra.mxu0 %v1675
    %1785 = vmatpush.msra.mxu0 %v1673
    %1786 = vmatpush.msra.mxu0 %v1671
    %1787 = vmatpush.msra.mxu0 %v1669
    %1788 = vmatpush.msra.mxu0 %v1667
    %1789 = vmatpush.msra.mxu0 %v1665
    %1790 = vmatmul.f32.gmra.mxu0 %v1662
    %v1791 = vpop.f32.mrf.mxu0
    %v1792 = vadd.f32 %v1731, %v1791
    %1793 = vdwg.mxu0
    %1794 = vmatpush.msra.mxu0 %v1727
    %1795 = vmatpush.msra.mxu0 %v1725
    %1796 = vmatpush.msra.mxu0 %v1723
    %1797 = vmatpush.msra.mxu0 %v1721
    %1798 = vmatpush.msra.mxu0 %v1719
    %1799 = vmatpush.msra.mxu0 %v1717
    %1800 = vmatpush.msra.mxu0 %v1715
    %1801 = vmatpush.msra.mxu0 %v1713
    %1802 = vmatpush.msra.mxu0 %v1711
    %1803 = vmatpush.msra.mxu0 %v1709
    %1804 = vmatpush.msra.mxu0 %v1707
    %1805 = vmatpush.msra.mxu0 %v1705
    %1806 = vmatpush.msra.mxu0 %v1703
    %1807 = vmatpush.msra.mxu0 %v1701
    %1808 = vmatpush.msra.mxu0 %v1699
    %1809 = vmatpush.msra.mxu0 %v1697
    %1810 = vmatmul.f32.gmra.mxu0 %v1663
    %v1811 = vpop.f32.mrf.mxu0
    %v1812 = vadd.f32 %v1792, %v1811
    %1813 = vdwg.mxu0
    %v1814 = vmax.f32 %v1772, 0.0
    %v1815 = vmax.f32 %v1812, 0.0
    %v1816 = vld [vmem:[#allocation10] sm:$0xff]
    %v1817 = vld [vmem:[#allocation10 + $0x8] sm:$0xff]
    %v1818 = vld [vmem:[#allocation10 + $0x10] sm:$0xff]
    %v1819 = vld [vmem:[#allocation10 + $0x18] sm:$0xff]
    %v1820 = vld [vmem:[#allocation10 + $0x20] sm:$0xff]
    %v1821 = vld [vmem:[#allocation10 + $0x28] sm:$0xff]
    %v1822 = vld [vmem:[#allocation10 + $0x30] sm:$0xff]
    %v1823 = vld [vmem:[#allocation10 + $0x38] sm:$0xff]
    %v1824 = vld [vmem:[#allocation10 + $0x40] sm:$0xff]
    %v1825 = vld [vmem:[#allocation10 + $0x48] sm:$0xff]
    %v1826 = vld [vmem:[#allocation10 + $0x50] sm:$0xff]
    %v1827 = vld [vmem:[#allocation10 + $0x58] sm:$0xff]
    %v1828 = vld [vmem:[#allocation10 + $0x60] sm:$0xff]
    %v1829 = vld [vmem:[#allocation10 + $0x68] sm:$0xff]
    %v1830 = vld [vmem:[#allocation10 + $0x70] sm:$0xff]
    %v1831 = vld [vmem:[#allocation10 + $0x78] sm:$0xff]
    %v1832 = vld [vmem:[#allocation10 + $0x80] sm:$0xff]
    %v1833 = vld [vmem:[#allocation10 + $0x88] sm:$0xff]
    %v1834 = vld [vmem:[#allocation10 + $0x90] sm:$0xff]
    %v1835 = vld [vmem:[#allocation10 + $0x98] sm:$0xff]
    %v1836 = vld [vmem:[#allocation10 + $0xa0] sm:$0xff]
    %v1837 = vld [vmem:[#allocation10 + $0xa8] sm:$0xff]
    %v1838 = vld [vmem:[#allocation10 + $0xb0] sm:$0xff]
    %v1839 = vld [vmem:[#allocation10 + $0xb8] sm:$0xff]
    %v1840 = vld [vmem:[#allocation10 + $0xc0] sm:$0xff]
    %v1841 = vld [vmem:[#allocation10 + $0xc8] sm:$0xff]
    %v1842 = vld [vmem:[#allocation10 + $0xd0] sm:$0xff]
    %v1843 = vld [vmem:[#allocation10 + $0xd8] sm:$0xff]
    %v1844 = vld [vmem:[#allocation10 + $0xe0] sm:$0xff]
    %v1845 = vld [vmem:[#allocation10 + $0xe8] sm:$0xff]
    %v1846 = vld [vmem:[#allocation10 + $0xf0] sm:$0xff]
    %v1847 = vld [vmem:[#allocation10 + $0xf8] sm:$0xff]
    %v1848 = vld [vmem:[%s9] sm:$0x1]
    %v1850 = vperm.slane %v1848, 0
    %1852 = vmatpush.msra.mxu0 %v1831
    %1853 = vmatpush.msra.mxu0 %v1830
    %1854 = vmatpush.msra.mxu0 %v1829
    %1855 = vmatpush.msra.mxu0 %v1828
    %1856 = vmatpush.msra.mxu0 %v1827
    %1857 = vmatpush.msra.mxu0 %v1826
    %1858 = vmatpush.msra.mxu0 %v1825
    %1859 = vmatpush.msra.mxu0 %v1824
    %1860 = vmatpush.msra.mxu0 %v1823
    %1861 = vmatpush.msra.mxu0 %v1822
    %1862 = vmatpush.msra.mxu0 %v1821
    %1863 = vmatpush.msra.mxu0 %v1820
    %1864 = vmatpush.msra.mxu0 %v1819
    %1865 = vmatpush.msra.mxu0 %v1818
    %1866 = vmatpush.msra.mxu0 %v1817
    %1867 = vmatpush.msra.mxu0 %v1816
    %1868 = vmatmul.f32.gmra.mxu0 %v1814
    %v1869 = vpop.f32.mrf.mxu0
    %v1870 = vadd.f32 %v1850, %v1869
    %1871 = vdwg.mxu0
    %1872 = vmatpush.msra.mxu0 %v1847
    %1873 = vmatpush.msra.mxu0 %v1846
    %1874 = vmatpush.msra.mxu0 %v1845
    %1875 = vmatpush.msra.mxu0 %v1844
    %1876 = vmatpush.msra.mxu0 %v1843
    %1877 = vmatpush.msra.mxu0 %v1842
    %1878 = vmatpush.msra.mxu0 %v1841
    %1879 = vmatpush.msra.mxu0 %v1840
    %1880 = vmatpush.msra.mxu0 %v1839
    %1881 = vmatpush.msra.mxu0 %v1838
    %1882 = vmatpush.msra.mxu0 %v1837
    %1883 = vmatpush.msra.mxu0 %v1836
    %1884 = vmatpush.msra.mxu0 %v1835
    %1885 = vmatpush.msra.mxu0 %v1834
    %1886 = vmatpush.msra.mxu0 %v1833
    %1887 = vmatpush.msra.mxu0 %v1832
    %1888 = vmatmul.f32.gmra.mxu0 %v1815
    %v1889 = vpop.f32.mrf.mxu0
    %v1890 = vadd.f32 %v1870, %v1889
    %1891 = vdwg.mxu0
    %1892 = vst [vmem:[#allocation11] sm:$0x3] %v1890
    // Predicated region
    $region62: #{combined_lstm_forward.1} parent=1 // pred_check
      _
    $region63: #{combined_lstm_forward.1} parent=1 // pred_check_branch
      %1894 = sbr.rel (0) target = $region65
    $region64: #{combined_lstm_forward.1} parent=1 // pred_region
      %1896 = vsyncadd [#allocation4], 0
      %s1898 = sshll.u32 [#allocation11], 4
      %s1899 = int_to_ptr.vmem [resolvable:$true] %s1898
      %s1900 = sshll.u32 %s10, 4
      %s1901 = int_to_ptr.hbm [resolvable:$true] %s1900
      %1903 = dma.vmem_to_hbm [thread:$0]  %s1899, 32, %s1901, [#allocation4]
    $region65: #{combined_lstm_forward.1} parent=1 // pred_fallthru
      _
    // Predicated region
    $region66: #{combined_lstm_forward.1} parent=1 // pred_check
      _
    $region67: #{combined_lstm_forward.1} parent=1 // pred_check_branch
      %1905 = sbr.rel (0) target = $region69
    $region68: #{combined_lstm_forward.1} parent=1 // pred_region
      %1907 = dma.done [#allocation4], 32
    $region69: #{combined_lstm_forward.1} parent=1 // pred_fallthru
      _
    %1908 = vsyncpa [#allocation3], 1
    %1909 = vsyncpa [#allocation6], 1
    %1910 = vsyncpa [#allocation9], 1
    %1911 = vsyncpa [#allocation4], 1

</llo_original>
